<compile_context>
chip_gen: v7x
topology: tpu7x:2x2x1
jax: 0.10.0
libtpu: 0.0.40
codegen_flags: <defaults>
</compile_context>

<pallas_src>
import jax
import jax.numpy as jnp
from jax.experimental import pallas as pl
from jax.experimental.pallas import tpu as pltpu

G_RATE = 1                       # matches `g_rate = 1` in the script
NLEVELS = 1 << G_RATE
INVAMP = 1.0 / (NLEVELS - 1)


def _compressor_kernel(x_ref, noise_ref,                 # VMEM tiles
                       we_ref, be_ref, wd_ref, bd_ref,   # SMEM scalars
                       xhat_ref, yhat_ref):              # VMEM tiles
    """One (batch sample, spatial tile) block.

    x_ref:     (1, C, T)  input pixels, channels on sublanes, space on lanes
    noise_ref: (1, L, T)  U(-0.5, 0.5) quantization noise
    we (C,L), be (L,), wd (L,C), bd (C,) in SMEM
    xhat_ref:  (1, C, T)
    yhat_ref:  (1, L, T)
    """
    C = x_ref.shape[1]
    L = noise_ref.shape[1]
    scale = float(NLEVELS - 1)

    # Load each input-channel row once; reuse across all L output channels.
    x_rows = [x_ref[0, c, :] for c in range(C)]          # C x (T,)

    # --- codec.encode: 1x1 conv over channels + sigmoid, unrolled on the VPU
    #     (C=4 / L=8 is far too small to feed the MXU usefully). ---
    yq_rows = []
    for l in range(L):
        acc = we_ref[0, l] * x_rows[0]
        for c in range(1, C):
            acc = acc + we_ref[c, l] * x_rows[c]
        y_l = jax.nn.sigmoid(acc + be_ref[l])

        # --- quantization: scale, add uniform noise, clamp, rescale ---
        yhat_l = jnp.clip(y_l * scale + noise_ref[0, l, :], 0.0, scale)
        yhat_ref[0, l, :] = yhat_l
        yq_rows.append(yhat_l if INVAMP == 1.0 else yhat_l * INVAMP)

    # --- codec.decode: 1x1 conv over latent channels, unrolled on the VPU ---
    for c in range(C):
        acc = wd_ref[0, c] * yq_rows[0]
        for l in range(1, L):
            acc = acc + wd_ref[l, c] * yq_rows[l]
        xhat_ref[0, c, :] = acc + bd_ref[c]


def _pick_spatial_tile(hw, cap=2048):
    """Largest multiple of 128 that divides hw (<= cap); else hw itself."""
    best = None
    t = 128
    while t <= min(hw, cap):
        if hw % t == 0:
            best = t
        t += 128
    return best if best is not None else hw


def compressor_forward(x_nchw, w_enc, b_enc, w_dec, b_dec, seed):
    """x_nchw: [N, C, H, W] f32.  Returns (xhat [N,C,H,W], yhat [N,L,H,W])."""
    N, C, H, W = x_nchw.shape
    L = w_enc.shape[1]
    HW = H * W
    M = N * HW

    # NCHW is already the layout the kernel wants: just flatten the spatial dims.
    x_flat = x_nchw.reshape(N, C, HW)

    # Quantization noise ~ U(-0.5, 0.5) (matches torch.distributions.Uniform).
    noise = jax.random.uniform(jax.random.PRNGKey(seed), (N, L, HW),
                               dtype=jnp.float32, minval=-0.5, maxval=0.5)

    tile_hw = _pick_spatial_tile(HW)
    grid = (N, HW // tile_hw)

    smem_spec = pl.BlockSpec(memory_space=pltpu.MemorySpace.SMEM)

    cost = pl.CostEstimate(
        flops=4 * M * C * L + 6 * M * L,
        transcendentals=M * L,                       # sigmoid
        bytes_accessed=4 * (2 * M * C + 2 * M * L + 2 * C * L + C + L),
    )

    xhat_flat, yhat_flat = pl.pallas_call(
        _compressor_kernel,
        out_shape=(
            jax.ShapeDtypeStruct((N, C, HW), jnp.float32),
            jax.ShapeDtypeStruct((N, L, HW), jnp.float32),
        ),
        grid=grid,
        in_specs=[
            pl.BlockSpec((1, C, tile_hw), lambda n, t: (n, 0, t)),   # x
            pl.BlockSpec((1, L, tile_hw), lambda n, t: (n, 0, t)),   # noise
            smem_spec,   # w_enc (C, L)
            smem_spec,   # b_enc (L,)
            smem_spec,   # w_dec (L, C)
            smem_spec,   # b_dec (C,)
        ],
        out_specs=(
            pl.BlockSpec((1, C, tile_hw), lambda n, t: (n, 0, t)),   # xhat
            pl.BlockSpec((1, L, tile_hw), lambda n, t: (n, 0, t)),   # yhat
        ),
        compiler_params=pltpu.CompilerParams(
            dimension_semantics=("parallel", "parallel"),
            vmem_limit_bytes=32 * 1024 * 1024,   # safe on v5e/v6e/v7x
        ),
        cost_estimate=cost,
    )(x_flat, noise, w_enc, b_enc, w_dec, b_dec)

    xhat = xhat_flat.reshape(N, C, H, W)
    yhat = yhat_flat.reshape(N, L, H, W)
    return xhat, yhat


if __name__ == "__main__":
    # Small deterministic shapes: batch=2, channels=4, spatial=16x16, latent=8
    N, C, H, W = 2, 4, 16, 16
    L = 8

    key = jax.random.PRNGKey(0)
    kx, kwe, kbe, kwd, kbd = jax.random.split(key, 5)

    x = jax.random.normal(kx, (N, C, H, W), dtype=jnp.float32)
    w_enc = jax.random.normal(kwe, (C, L), dtype=jnp.float32) * 0.1
    b_enc = jax.random.normal(kbe, (L,), dtype=jnp.float32) * 0.1
    w_dec = jax.random.normal(kwd, (L, C), dtype=jnp.float32) * 0.1
    b_dec = jax.random.normal(kbd, (C,), dtype=jnp.float32) * 0.1

    xhat, yhat = compressor_forward(x, w_enc, b_enc, w_dec, b_dec, seed=0)
    jax.block_until_ready((xhat, yhat))

    # Pure-JAX reference of the same forward pass (same noise draw).
    noise = jax.random.uniform(jax.random.PRNGKey(0), (N, L, H * W),
                               dtype=jnp.float32, minval=-0.5, maxval=0.5)
    hi = jax.lax.Precision.HIGHEST
    y_ref = jax.nn.sigmoid(
        jnp.einsum("nchw,cl->nlhw", x, w_enc, precision=hi)
        + b_enc[None, :, None, None])
    yhat_ref = jnp.clip(y_ref * (NLEVELS - 1) + noise.reshape(N, L, H, W),
                        0.0, NLEVELS - 1)
    xhat_ref = (jnp.einsum("nlhw,lc->nchw", yhat_ref * INVAMP, w_dec,
                           precision=hi)
                + b_dec[None, :, None, None])

    assert xhat.shape == (N, C, H, W)
    assert yhat.shape == (N, L, H, W)
    assert bool(jnp.all(yhat >= 0.0)) and bool(jnp.all(yhat <= NLEVELS - 1))
    assert bool(jnp.allclose(yhat, yhat_ref, atol=1e-4, rtol=1e-4))
    assert bool(jnp.allclose(xhat, xhat_ref, atol=1e-4, rtol=1e-4))

    print("KERNEL_OK")
</pallas_src>

<mosaic_0001>
module attributes {stable_mosaic.version = 11 : i64} {
  func.func @_compressor_kernel(%arg0: i32, %arg1: i32, %arg2: memref<1x4x256xf32, #tpu.memory_space<vmem>>, %arg3: memref<1x8x256xf32, #tpu.memory_space<vmem>>, %arg4: memref<4x8xf32, #tpu.memory_space<smem>>, %arg5: memref<8xf32, #tpu.memory_space<smem>>, %arg6: memref<8x4xf32, #tpu.memory_space<smem>>, %arg7: memref<4xf32, #tpu.memory_space<smem>>, %arg8: memref<1x4x256xf32, #tpu.memory_space<vmem>>, %arg9: memref<1x8x256xf32, #tpu.memory_space<vmem>>) attributes {dimension_semantics = [#tpu.dimension_semantics<parallel>, #tpu.dimension_semantics<parallel>], iteration_bounds = array<i64: 2, 1>, scalar_prefetch = 0 : i64, scratch_operands = 0 : i64, tpu.core_type = #tpu.core_type<tc>, window_params = [{transform_indices = @transform_0, window_bounds = array<i64: 1, 4, 256>}, {transform_indices = @transform_1, window_bounds = array<i64: 1, 8, 256>}, {transform_indices = @transform_2, window_bounds = array<i64: 4, 8>}, {transform_indices = @transform_3, window_bounds = array<i64: 8>}, {transform_indices = @transform_4, window_bounds = array<i64: 8, 4>}, {transform_indices = @transform_5, window_bounds = array<i64: 4>}, {transform_indices = @transform_6, window_bounds = array<i64: 1, 4, 256>}, {transform_indices = @transform_7, window_bounds = array<i64: 1, 8, 256>}]} {
    %c0 = arith.constant 0 : index
    %c0_0 = arith.constant 0 : index
    %c0_1 = arith.constant 0 : index
    %0 = vector.load %arg2[%c0, %c0_0, %c0_1] : memref<1x4x256xf32, #tpu.memory_space<vmem>>, vector<1x1x256xf32>
    %1 = vector.shape_cast %0 : vector<1x1x256xf32> to vector<256xf32>
    %c0_2 = arith.constant 0 : index
    %c1 = arith.constant 1 : index
    %c0_3 = arith.constant 0 : index
    %2 = vector.load %arg2[%c0_2, %c1, %c0_3] : memref<1x4x256xf32, #tpu.memory_space<vmem>>, vector<1x1x256xf32>
    %3 = vector.shape_cast %2 : vector<1x1x256xf32> to vector<256xf32>
    %c0_4 = arith.constant 0 : index
    %c2 = arith.constant 2 : index
    %c0_5 = arith.constant 0 : index
    %4 = vector.load %arg2[%c0_4, %c2, %c0_5] : memref<1x4x256xf32, #tpu.memory_space<vmem>>, vector<1x1x256xf32>
    %5 = vector.shape_cast %4 : vector<1x1x256xf32> to vector<256xf32>
    %c0_6 = arith.constant 0 : index
    %c3 = arith.constant 3 : index
    %c0_7 = arith.constant 0 : index
    %6 = vector.load %arg2[%c0_6, %c3, %c0_7] : memref<1x4x256xf32, #tpu.memory_space<vmem>>, vector<1x1x256xf32>
    %7 = vector.shape_cast %6 : vector<1x1x256xf32> to vector<256xf32>
    %c0_8 = arith.constant 0 : index
    %c0_9 = arith.constant 0 : index
    %8 = memref.load %arg4[%c0_8, %c0_9] : memref<4x8xf32, #tpu.memory_space<smem>>
    %9 = vector.broadcast %8 : f32 to vector<256xf32>
    %10 = arith.mulf %9, %1 : vector<256xf32>
    %c1_10 = arith.constant 1 : index
    %c0_11 = arith.constant 0 : index
    %11 = memref.load %arg4[%c1_10, %c0_11] : memref<4x8xf32, #tpu.memory_space<smem>>
    %12 = vector.broadcast %11 : f32 to vector<256xf32>
    %13 = arith.mulf %12, %3 : vector<256xf32>
    %14 = arith.addf %10, %13 : vector<256xf32>
    %c2_12 = arith.constant 2 : index
    %c0_13 = arith.constant 0 : index
    %15 = memref.load %arg4[%c2_12, %c0_13] : memref<4x8xf32, #tpu.memory_space<smem>>
    %16 = vector.broadcast %15 : f32 to vector<256xf32>
    %17 = arith.mulf %16, %5 : vector<256xf32>
    %18 = arith.addf %14, %17 : vector<256xf32>
    %c3_14 = arith.constant 3 : index
    %c0_15 = arith.constant 0 : index
    %19 = memref.load %arg4[%c3_14, %c0_15] : memref<4x8xf32, #tpu.memory_space<smem>>
    %20 = vector.broadcast %19 : f32 to vector<256xf32>
    %21 = arith.mulf %20, %7 : vector<256xf32>
    %22 = arith.addf %18, %21 : vector<256xf32>
    %c0_16 = arith.constant 0 : index
    %23 = memref.load %arg5[%c0_16] : memref<8xf32, #tpu.memory_space<smem>>
    %24 = vector.broadcast %23 : f32 to vector<256xf32>
    %25 = arith.addf %22, %24 : vector<256xf32>
    %26 = arith.negf %25 : vector<256xf32>
    %27 = math.exp %26 : vector<256xf32>
    %cst = arith.constant 1.000000e+00 : f32
    %28 = vector.broadcast %cst : f32 to vector<256xf32>
    %29 = arith.addf %28, %27 : vector<256xf32>
    %30 = arith.divf %28, %29 : vector<256xf32>
    %cst_17 = arith.constant 1.000000e+00 : f32
    %31 = vector.broadcast %cst_17 : f32 to vector<256xf32>
    %32 = arith.mulf %30, %31 : vector<256xf32>
    %c0_18 = arith.constant 0 : index
    %c0_19 = arith.constant 0 : index
    %c0_20 = arith.constant 0 : index
    %33 = vector.load %arg3[%c0_18, %c0_19, %c0_20] : memref<1x8x256xf32, #tpu.memory_space<vmem>>, vector<1x1x256xf32>
    %34 = vector.shape_cast %33 : vector<1x1x256xf32> to vector<256xf32>
    %35 = arith.addf %32, %34 : vector<256xf32>
    %cst_21 = arith.constant 0.000000e+00 : f32
    %cst_22 = arith.constant 1.000000e+00 : f32
    %36 = vector.broadcast %cst_21 : f32 to vector<256xf32>
    %37 = arith.maximumf %36, %35 : vector<256xf32>
    %38 = vector.broadcast %cst_22 : f32 to vector<256xf32>
    %39 = arith.minimumf %38, %37 : vector<256xf32>
    %c0_23 = arith.constant 0 : index
    %c0_24 = arith.constant 0 : index
    %c0_25 = arith.constant 0 : index
    %40 = vector.load %arg9[%c0_23, %c0_24, %c0_25] : memref<1x8x256xf32, #tpu.memory_space<vmem>>, vector<1x1x256xf32>
    %41 = vector.shape_cast %40 : vector<1x1x256xf32> to vector<256xf32>
    %42 = vector.shape_cast %39 : vector<256xf32> to vector<1x1x256xf32>
    tpu.vector_store %arg9[%c0_23, %c0_24, %c0_25], %42 {strides = array<i32>} : memref<1x8x256xf32, #tpu.memory_space<vmem>>, vector<1x1x256xf32>,
    %c0_26 = arith.constant 0 : index
    %c1_27 = arith.constant 1 : index
    %43 = memref.load %arg4[%c0_26, %c1_27] : memref<4x8xf32, #tpu.memory_space<smem>>
    %44 = vector.broadcast %43 : f32 to vector<256xf32>
    %45 = arith.mulf %44, %1 : vector<256xf32>
    %c1_28 = arith.constant 1 : index
    %c1_29 = arith.constant 1 : index
    %46 = memref.load %arg4[%c1_28, %c1_29] : memref<4x8xf32, #tpu.memory_space<smem>>
    %47 = vector.broadcast %46 : f32 to vector<256xf32>
    %48 = arith.mulf %47, %3 : vector<256xf32>
    %49 = arith.addf %45, %48 : vector<256xf32>
    %c2_30 = arith.constant 2 : index
    %c1_31 = arith.constant 1 : index
    %50 = memref.load %arg4[%c2_30, %c1_31] : memref<4x8xf32, #tpu.memory_space<smem>>
    %51 = vector.broadcast %50 : f32 to vector<256xf32>
    %52 = arith.mulf %51, %5 : vector<256xf32>
    %53 = arith.addf %49, %52 : vector<256xf32>
    %c3_32 = arith.constant 3 : index
    %c1_33 = arith.constant 1 : index
    %54 = memref.load %arg4[%c3_32, %c1_33] : memref<4x8xf32, #tpu.memory_space<smem>>
    %55 = vector.broadcast %54 : f32 to vector<256xf32>
    %56 = arith.mulf %55, %7 : vector<256xf32>
    %57 = arith.addf %53, %56 : vector<256xf32>
    %c1_34 = arith.constant 1 : index
    %58 = memref.load %arg5[%c1_34] : memref<8xf32, #tpu.memory_space<smem>>
    %59 = vector.broadcast %58 : f32 to vector<256xf32>
    %60 = arith.addf %57, %59 : vector<256xf32>
    %61 = arith.negf %60 : vector<256xf32>
    %62 = math.exp %61 : vector<256xf32>
    %cst_35 = arith.constant 1.000000e+00 : f32
    %63 = vector.broadcast %cst_35 : f32 to vector<256xf32>
    %64 = arith.addf %63, %62 : vector<256xf32>
    %65 = arith.divf %63, %64 : vector<256xf32>
    %cst_36 = arith.constant 1.000000e+00 : f32
    %66 = vector.broadcast %cst_36 : f32 to vector<256xf32>
    %67 = arith.mulf %65, %66 : vector<256xf32>
    %c0_37 = arith.constant 0 : index
    %c1_38 = arith.constant 1 : index
    %c0_39 = arith.constant 0 : index
    %68 = vector.load %arg3[%c0_37, %c1_38, %c0_39] : memref<1x8x256xf32, #tpu.memory_space<vmem>>, vector<1x1x256xf32>
    %69 = vector.shape_cast %68 : vector<1x1x256xf32> to vector<256xf32>
    %70 = arith.addf %67, %69 : vector<256xf32>
    %cst_40 = arith.constant 0.000000e+00 : f32
    %cst_41 = arith.constant 1.000000e+00 : f32
    %71 = vector.broadcast %cst_40 : f32 to vector<256xf32>
    %72 = arith.maximumf %71, %70 : vector<256xf32>
    %73 = vector.broadcast %cst_41 : f32 to vector<256xf32>
    %74 = arith.minimumf %73, %72 : vector<256xf32>
    %c0_42 = arith.constant 0 : index
    %c1_43 = arith.constant 1 : index
    %c0_44 = arith.constant 0 : index
    %75 = vector.load %arg9[%c0_42, %c1_43, %c0_44] : memref<1x8x256xf32, #tpu.memory_space<vmem>>, vector<1x1x256xf32>
    %76 = vector.shape_cast %75 : vector<1x1x256xf32> to vector<256xf32>
    %77 = vector.shape_cast %74 : vector<256xf32> to vector<1x1x256xf32>
    tpu.vector_store %arg9[%c0_42, %c1_43, %c0_44], %77 {strides = array<i32>} : memref<1x8x256xf32, #tpu.memory_space<vmem>>, vector<1x1x256xf32>,
    %c0_45 = arith.constant 0 : index
    %c2_46 = arith.constant 2 : index
    %78 = memref.load %arg4[%c0_45, %c2_46] : memref<4x8xf32, #tpu.memory_space<smem>>
    %79 = vector.broadcast %78 : f32 to vector<256xf32>
    %80 = arith.mulf %79, %1 : vector<256xf32>
    %c1_47 = arith.constant 1 : index
    %c2_48 = arith.constant 2 : index
    %81 = memref.load %arg4[%c1_47, %c2_48] : memref<4x8xf32, #tpu.memory_space<smem>>
    %82 = vector.broadcast %81 : f32 to vector<256xf32>
    %83 = arith.mulf %82, %3 : vector<256xf32>
    %84 = arith.addf %80, %83 : vector<256xf32>
    %c2_49 = arith.constant 2 : index
    %c2_50 = arith.constant 2 : index
    %85 = memref.load %arg4[%c2_49, %c2_50] : memref<4x8xf32, #tpu.memory_space<smem>>
    %86 = vector.broadcast %85 : f32 to vector<256xf32>
    %87 = arith.mulf %86, %5 : vector<256xf32>
    %88 = arith.addf %84, %87 : vector<256xf32>
    %c3_51 = arith.constant 3 : index
    %c2_52 = arith.constant 2 : index
    %89 = memref.load %arg4[%c3_51, %c2_52] : memref<4x8xf32, #tpu.memory_space<smem>>
    %90 = vector.broadcast %89 : f32 to vector<256xf32>
    %91 = arith.mulf %90, %7 : vector<256xf32>
    %92 = arith.addf %88, %91 : vector<256xf32>
    %c2_53 = arith.constant 2 : index
    %93 = memref.load %arg5[%c2_53] : memref<8xf32, #tpu.memory_space<smem>>
    %94 = vector.broadcast %93 : f32 to vector<256xf32>
    %95 = arith.addf %92, %94 : vector<256xf32>
    %96 = arith.negf %95 : vector<256xf32>
    %97 = math.exp %96 : vector<256xf32>
    %cst_54 = arith.constant 1.000000e+00 : f32
    %98 = vector.broadcast %cst_54 : f32 to vector<256xf32>
    %99 = arith.addf %98, %97 : vector<256xf32>
    %100 = arith.divf %98, %99 : vector<256xf32>
    %cst_55 = arith.constant 1.000000e+00 : f32
    %101 = vector.broadcast %cst_55 : f32 to vector<256xf32>
    %102 = arith.mulf %100, %101 : vector<256xf32>
    %c0_56 = arith.constant 0 : index
    %c2_57 = arith.constant 2 : index
    %c0_58 = arith.constant 0 : index
    %103 = vector.load %arg3[%c0_56, %c2_57, %c0_58] : memref<1x8x256xf32, #tpu.memory_space<vmem>>, vector<1x1x256xf32>
    %104 = vector.shape_cast %103 : vector<1x1x256xf32> to vector<256xf32>
    %105 = arith.addf %102, %104 : vector<256xf32>
    %cst_59 = arith.constant 0.000000e+00 : f32
    %cst_60 = arith.constant 1.000000e+00 : f32
    %106 = vector.broadcast %cst_59 : f32 to vector<256xf32>
    %107 = arith.maximumf %106, %105 : vector<256xf32>
    %108 = vector.broadcast %cst_60 : f32 to vector<256xf32>
    %109 = arith.minimumf %108, %107 : vector<256xf32>
    %c0_61 = arith.constant 0 : index
    %c2_62 = arith.constant 2 : index
    %c0_63 = arith.constant 0 : index
    %110 = vector.load %arg9[%c0_61, %c2_62, %c0_63] : memref<1x8x256xf32, #tpu.memory_space<vmem>>, vector<1x1x256xf32>
    %111 = vector.shape_cast %110 : vector<1x1x256xf32> to vector<256xf32>
    %112 = vector.shape_cast %109 : vector<256xf32> to vector<1x1x256xf32>
    tpu.vector_store %arg9[%c0_61, %c2_62, %c0_63], %112 {strides = array<i32>} : memref<1x8x256xf32, #tpu.memory_space<vmem>>, vector<1x1x256xf32>,
    %c0_64 = arith.constant 0 : index
    %c3_65 = arith.constant 3 : index
    %113 = memref.load %arg4[%c0_64, %c3_65] : memref<4x8xf32, #tpu.memory_space<smem>>
    %114 = vector.broadcast %113 : f32 to vector<256xf32>
    %115 = arith.mulf %114, %1 : vector<256xf32>
    %c1_66 = arith.constant 1 : index
    %c3_67 = arith.constant 3 : index
    %116 = memref.load %arg4[%c1_66, %c3_67] : memref<4x8xf32, #tpu.memory_space<smem>>
    %117 = vector.broadcast %116 : f32 to vector<256xf32>
    %118 = arith.mulf %117, %3 : vector<256xf32>
    %119 = arith.addf %115, %118 : vector<256xf32>
    %c2_68 = arith.constant 2 : index
    %c3_69 = arith.constant 3 : index
    %120 = memref.load %arg4[%c2_68, %c3_69] : memref<4x8xf32, #tpu.memory_space<smem>>
    %121 = vector.broadcast %120 : f32 to vector<256xf32>
    %122 = arith.mulf %121, %5 : vector<256xf32>
    %123 = arith.addf %119, %122 : vector<256xf32>
    %c3_70 = arith.constant 3 : index
    %c3_71 = arith.constant 3 : index
    %124 = memref.load %arg4[%c3_70, %c3_71] : memref<4x8xf32, #tpu.memory_space<smem>>
    %125 = vector.broadcast %124 : f32 to vector<256xf32>
    %126 = arith.mulf %125, %7 : vector<256xf32>
    %127 = arith.addf %123, %126 : vector<256xf32>
    %c3_72 = arith.constant 3 : index
    %128 = memref.load %arg5[%c3_72] : memref<8xf32, #tpu.memory_space<smem>>
    %129 = vector.broadcast %128 : f32 to vector<256xf32>
    %130 = arith.addf %127, %129 : vector<256xf32>
    %131 = arith.negf %130 : vector<256xf32>
    %132 = math.exp %131 : vector<256xf32>
    %cst_73 = arith.constant 1.000000e+00 : f32
    %133 = vector.broadcast %cst_73 : f32 to vector<256xf32>
    %134 = arith.addf %133, %132 : vector<256xf32>
    %135 = arith.divf %133, %134 : vector<256xf32>
    %cst_74 = arith.constant 1.000000e+00 : f32
    %136 = vector.broadcast %cst_74 : f32 to vector<256xf32>
    %137 = arith.mulf %135, %136 : vector<256xf32>
    %c0_75 = arith.constant 0 : index
    %c3_76 = arith.constant 3 : index
    %c0_77 = arith.constant 0 : index
    %138 = vector.load %arg3[%c0_75, %c3_76, %c0_77] : memref<1x8x256xf32, #tpu.memory_space<vmem>>, vector<1x1x256xf32>
    %139 = vector.shape_cast %138 : vector<1x1x256xf32> to vector<256xf32>
    %140 = arith.addf %137, %139 : vector<256xf32>
    %cst_78 = arith.constant 0.000000e+00 : f32
    %cst_79 = arith.constant 1.000000e+00 : f32
    %141 = vector.broadcast %cst_78 : f32 to vector<256xf32>
    %142 = arith.maximumf %141, %140 : vector<256xf32>
    %143 = vector.broadcast %cst_79 : f32 to vector<256xf32>
    %144 = arith.minimumf %143, %142 : vector<256xf32>
    %c0_80 = arith.constant 0 : index
    %c3_81 = arith.constant 3 : index
    %c0_82 = arith.constant 0 : index
    %145 = vector.load %arg9[%c0_80, %c3_81, %c0_82] : memref<1x8x256xf32, #tpu.memory_space<vmem>>, vector<1x1x256xf32>
    %146 = vector.shape_cast %145 : vector<1x1x256xf32> to vector<256xf32>
    %147 = vector.shape_cast %144 : vector<256xf32> to vector<1x1x256xf32>
    tpu.vector_store %arg9[%c0_80, %c3_81, %c0_82], %147 {strides = array<i32>} : memref<1x8x256xf32, #tpu.memory_space<vmem>>, vector<1x1x256xf32>,
    %c0_83 = arith.constant 0 : index
    %c4 = arith.constant 4 : index
    %148 = memref.load %arg4[%c0_83, %c4] : memref<4x8xf32, #tpu.memory_space<smem>>
    %149 = vector.broadcast %148 : f32 to vector<256xf32>
    %150 = arith.mulf %149, %1 : vector<256xf32>
    %c1_84 = arith.constant 1 : index
    %c4_85 = arith.constant 4 : index
    %151 = memref.load %arg4[%c1_84, %c4_85] : memref<4x8xf32, #tpu.memory_space<smem>>
    %152 = vector.broadcast %151 : f32 to vector<256xf32>
    %153 = arith.mulf %152, %3 : vector<256xf32>
    %154 = arith.addf %150, %153 : vector<256xf32>
    %c2_86 = arith.constant 2 : index
    %c4_87 = arith.constant 4 : index
    %155 = memref.load %arg4[%c2_86, %c4_87] : memref<4x8xf32, #tpu.memory_space<smem>>
    %156 = vector.broadcast %155 : f32 to vector<256xf32>
    %157 = arith.mulf %156, %5 : vector<256xf32>
    %158 = arith.addf %154, %157 : vector<256xf32>
    %c3_88 = arith.constant 3 : index
    %c4_89 = arith.constant 4 : index
    %159 = memref.load %arg4[%c3_88, %c4_89] : memref<4x8xf32, #tpu.memory_space<smem>>
    %160 = vector.broadcast %159 : f32 to vector<256xf32>
    %161 = arith.mulf %160, %7 : vector<256xf32>
    %162 = arith.addf %158, %161 : vector<256xf32>
    %c4_90 = arith.constant 4 : index
    %163 = memref.load %arg5[%c4_90] : memref<8xf32, #tpu.memory_space<smem>>
    %164 = vector.broadcast %163 : f32 to vector<256xf32>
    %165 = arith.addf %162, %164 : vector<256xf32>
    %166 = arith.negf %165 : vector<256xf32>
    %167 = math.exp %166 : vector<256xf32>
    %cst_91 = arith.constant 1.000000e+00 : f32
    %168 = vector.broadcast %cst_91 : f32 to vector<256xf32>
    %169 = arith.addf %168, %167 : vector<256xf32>
    %170 = arith.divf %168, %169 : vector<256xf32>
    %cst_92 = arith.constant 1.000000e+00 : f32
    %171 = vector.broadcast %cst_92 : f32 to vector<256xf32>
    %172 = arith.mulf %170, %171 : vector<256xf32>
    %c0_93 = arith.constant 0 : index
    %c4_94 = arith.constant 4 : index
    %c0_95 = arith.constant 0 : index
    %173 = vector.load %arg3[%c0_93, %c4_94, %c0_95] : memref<1x8x256xf32, #tpu.memory_space<vmem>>, vector<1x1x256xf32>
    %174 = vector.shape_cast %173 : vector<1x1x256xf32> to vector<256xf32>
    %175 = arith.addf %172, %174 : vector<256xf32>
    %cst_96 = arith.constant 0.000000e+00 : f32
    %cst_97 = arith.constant 1.000000e+00 : f32
    %176 = vector.broadcast %cst_96 : f32 to vector<256xf32>
    %177 = arith.maximumf %176, %175 : vector<256xf32>
    %178 = vector.broadcast %cst_97 : f32 to vector<256xf32>
    %179 = arith.minimumf %178, %177 : vector<256xf32>
    %c0_98 = arith.constant 0 : index
    %c4_99 = arith.constant 4 : index
    %c0_100 = arith.constant 0 : index
    %180 = vector.load %arg9[%c0_98, %c4_99, %c0_100] : memref<1x8x256xf32, #tpu.memory_space<vmem>>, vector<1x1x256xf32>
    %181 = vector.shape_cast %180 : vector<1x1x256xf32> to vector<256xf32>
    %182 = vector.shape_cast %179 : vector<256xf32> to vector<1x1x256xf32>
    tpu.vector_store %arg9[%c0_98, %c4_99, %c0_100], %182 {strides = array<i32>} : memref<1x8x256xf32, #tpu.memory_space<vmem>>, vector<1x1x256xf32>,
    %c0_101 = arith.constant 0 : index
    %c5 = arith.constant 5 : index
    %183 = memref.load %arg4[%c0_101, %c5] : memref<4x8xf32, #tpu.memory_space<smem>>
    %184 = vector.broadcast %183 : f32 to vector<256xf32>
    %185 = arith.mulf %184, %1 : vector<256xf32>
    %c1_102 = arith.constant 1 : index
    %c5_103 = arith.constant 5 : index
    %186 = memref.load %arg4[%c1_102, %c5_103] : memref<4x8xf32, #tpu.memory_space<smem>>
    %187 = vector.broadcast %186 : f32 to vector<256xf32>
    %188 = arith.mulf %187, %3 : vector<256xf32>
    %189 = arith.addf %185, %188 : vector<256xf32>
    %c2_104 = arith.constant 2 : index
    %c5_105 = arith.constant 5 : index
    %190 = memref.load %arg4[%c2_104, %c5_105] : memref<4x8xf32, #tpu.memory_space<smem>>
    %191 = vector.broadcast %190 : f32 to vector<256xf32>
    %192 = arith.mulf %191, %5 : vector<256xf32>
    %193 = arith.addf %189, %192 : vector<256xf32>
    %c3_106 = arith.constant 3 : index
    %c5_107 = arith.constant 5 : index
    %194 = memref.load %arg4[%c3_106, %c5_107] : memref<4x8xf32, #tpu.memory_space<smem>>
    %195 = vector.broadcast %194 : f32 to vector<256xf32>
    %196 = arith.mulf %195, %7 : vector<256xf32>
    %197 = arith.addf %193, %196 : vector<256xf32>
    %c5_108 = arith.constant 5 : index
    %198 = memref.load %arg5[%c5_108] : memref<8xf32, #tpu.memory_space<smem>>
    %199 = vector.broadcast %198 : f32 to vector<256xf32>
    %200 = arith.addf %197, %199 : vector<256xf32>
    %201 = arith.negf %200 : vector<256xf32>
    %202 = math.exp %201 : vector<256xf32>
    %cst_109 = arith.constant 1.000000e+00 : f32
    %203 = vector.broadcast %cst_109 : f32 to vector<256xf32>
    %204 = arith.addf %203, %202 : vector<256xf32>
    %205 = arith.divf %203, %204 : vector<256xf32>
    %cst_110 = arith.constant 1.000000e+00 : f32
    %206 = vector.broadcast %cst_110 : f32 to vector<256xf32>
    %207 = arith.mulf %205, %206 : vector<256xf32>
    %c0_111 = arith.constant 0 : index
    %c5_112 = arith.constant 5 : index
    %c0_113 = arith.constant 0 : index
    %208 = vector.load %arg3[%c0_111, %c5_112, %c0_113] : memref<1x8x256xf32, #tpu.memory_space<vmem>>, vector<1x1x256xf32>
    %209 = vector.shape_cast %208 : vector<1x1x256xf32> to vector<256xf32>
    %210 = arith.addf %207, %209 : vector<256xf32>
    %cst_114 = arith.constant 0.000000e+00 : f32
    %cst_115 = arith.constant 1.000000e+00 : f32
    %211 = vector.broadcast %cst_114 : f32 to vector<256xf32>
    %212 = arith.maximumf %211, %210 : vector<256xf32>
    %213 = vector.broadcast %cst_115 : f32 to vector<256xf32>
    %214 = arith.minimumf %213, %212 : vector<256xf32>
    %c0_116 = arith.constant 0 : index
    %c5_117 = arith.constant 5 : index
    %c0_118 = arith.constant 0 : index
    %215 = vector.load %arg9[%c0_116, %c5_117, %c0_118] : memref<1x8x256xf32, #tpu.memory_space<vmem>>, vector<1x1x256xf32>
    %216 = vector.shape_cast %215 : vector<1x1x256xf32> to vector<256xf32>
    %217 = vector.shape_cast %214 : vector<256xf32> to vector<1x1x256xf32>
    tpu.vector_store %arg9[%c0_116, %c5_117, %c0_118], %217 {strides = array<i32>} : memref<1x8x256xf32, #tpu.memory_space<vmem>>, vector<1x1x256xf32>,
    %c0_119 = arith.constant 0 : index
    %c6 = arith.constant 6 : index
    %218 = memref.load %arg4[%c0_119, %c6] : memref<4x8xf32, #tpu.memory_space<smem>>
    %219 = vector.broadcast %218 : f32 to vector<256xf32>
    %220 = arith.mulf %219, %1 : vector<256xf32>
    %c1_120 = arith.constant 1 : index
    %c6_121 = arith.constant 6 : index
    %221 = memref.load %arg4[%c1_120, %c6_121] : memref<4x8xf32, #tpu.memory_space<smem>>
    %222 = vector.broadcast %221 : f32 to vector<256xf32>
    %223 = arith.mulf %222, %3 : vector<256xf32>
    %224 = arith.addf %220, %223 : vector<256xf32>
    %c2_122 = arith.constant 2 : index
    %c6_123 = arith.constant 6 : index
    %225 = memref.load %arg4[%c2_122, %c6_123] : memref<4x8xf32, #tpu.memory_space<smem>>
    %226 = vector.broadcast %225 : f32 to vector<256xf32>
    %227 = arith.mulf %226, %5 : vector<256xf32>
    %228 = arith.addf %224, %227 : vector<256xf32>
    %c3_124 = arith.constant 3 : index
    %c6_125 = arith.constant 6 : index
    %229 = memref.load %arg4[%c3_124, %c6_125] : memref<4x8xf32, #tpu.memory_space<smem>>
    %230 = vector.broadcast %229 : f32 to vector<256xf32>
    %231 = arith.mulf %230, %7 : vector<256xf32>
    %232 = arith.addf %228, %231 : vector<256xf32>
    %c6_126 = arith.constant 6 : index
    %233 = memref.load %arg5[%c6_126] : memref<8xf32, #tpu.memory_space<smem>>
    %234 = vector.broadcast %233 : f32 to vector<256xf32>
    %235 = arith.addf %232, %234 : vector<256xf32>
    %236 = arith.negf %235 : vector<256xf32>
    %237 = math.exp %236 : vector<256xf32>
    %cst_127 = arith.constant 1.000000e+00 : f32
    %238 = vector.broadcast %cst_127 : f32 to vector<256xf32>
    %239 = arith.addf %238, %237 : vector<256xf32>
    %240 = arith.divf %238, %239 : vector<256xf32>
    %cst_128 = arith.constant 1.000000e+00 : f32
    %241 = vector.broadcast %cst_128 : f32 to vector<256xf32>
    %242 = arith.mulf %240, %241 : vector<256xf32>
    %c0_129 = arith.constant 0 : index
    %c6_130 = arith.constant 6 : index
    %c0_131 = arith.constant 0 : index
    %243 = vector.load %arg3[%c0_129, %c6_130, %c0_131] : memref<1x8x256xf32, #tpu.memory_space<vmem>>, vector<1x1x256xf32>
    %244 = vector.shape_cast %243 : vector<1x1x256xf32> to vector<256xf32>
    %245 = arith.addf %242, %244 : vector<256xf32>
    %cst_132 = arith.constant 0.000000e+00 : f32
    %cst_133 = arith.constant 1.000000e+00 : f32
    %246 = vector.broadcast %cst_132 : f32 to vector<256xf32>
    %247 = arith.maximumf %246, %245 : vector<256xf32>
    %248 = vector.broadcast %cst_133 : f32 to vector<256xf32>
    %249 = arith.minimumf %248, %247 : vector<256xf32>
    %c0_134 = arith.constant 0 : index
    %c6_135 = arith.constant 6 : index
    %c0_136 = arith.constant 0 : index
    %250 = vector.load %arg9[%c0_134, %c6_135, %c0_136] : memref<1x8x256xf32, #tpu.memory_space<vmem>>, vector<1x1x256xf32>
    %251 = vector.shape_cast %250 : vector<1x1x256xf32> to vector<256xf32>
    %252 = vector.shape_cast %249 : vector<256xf32> to vector<1x1x256xf32>
    tpu.vector_store %arg9[%c0_134, %c6_135, %c0_136], %252 {strides = array<i32>} : memref<1x8x256xf32, #tpu.memory_space<vmem>>, vector<1x1x256xf32>,
    %c0_137 = arith.constant 0 : index
    %c7 = arith.constant 7 : index
    %253 = memref.load %arg4[%c0_137, %c7] : memref<4x8xf32, #tpu.memory_space<smem>>
    %254 = vector.broadcast %253 : f32 to vector<256xf32>
    %255 = arith.mulf %254, %1 : vector<256xf32>
    %c1_138 = arith.constant 1 : index
    %c7_139 = arith.constant 7 : index
    %256 = memref.load %arg4[%c1_138, %c7_139] : memref<4x8xf32, #tpu.memory_space<smem>>
    %257 = vector.broadcast %256 : f32 to vector<256xf32>
    %258 = arith.mulf %257, %3 : vector<256xf32>
    %259 = arith.addf %255, %258 : vector<256xf32>
    %c2_140 = arith.constant 2 : index
    %c7_141 = arith.constant 7 : index
    %260 = memref.load %arg4[%c2_140, %c7_141] : memref<4x8xf32, #tpu.memory_space<smem>>
    %261 = vector.broadcast %260 : f32 to vector<256xf32>
    %262 = arith.mulf %261, %5 : vector<256xf32>
    %263 = arith.addf %259, %262 : vector<256xf32>
    %c3_142 = arith.constant 3 : index
    %c7_143 = arith.constant 7 : index
    %264 = memref.load %arg4[%c3_142, %c7_143] : memref<4x8xf32, #tpu.memory_space<smem>>
    %265 = vector.broadcast %264 : f32 to vector<256xf32>
    %266 = arith.mulf %265, %7 : vector<256xf32>
    %267 = arith.addf %263, %266 : vector<256xf32>
    %c7_144 = arith.constant 7 : index
    %268 = memref.load %arg5[%c7_144] : memref<8xf32, #tpu.memory_space<smem>>
    %269 = vector.broadcast %268 : f32 to vector<256xf32>
    %270 = arith.addf %267, %269 : vector<256xf32>
    %271 = arith.negf %270 : vector<256xf32>
    %272 = math.exp %271 : vector<256xf32>
    %cst_145 = arith.constant 1.000000e+00 : f32
    %273 = vector.broadcast %cst_145 : f32 to vector<256xf32>
    %274 = arith.addf %273, %272 : vector<256xf32>
    %275 = arith.divf %273, %274 : vector<256xf32>
    %cst_146 = arith.constant 1.000000e+00 : f32
    %276 = vector.broadcast %cst_146 : f32 to vector<256xf32>
    %277 = arith.mulf %275, %276 : vector<256xf32>
    %c0_147 = arith.constant 0 : index
    %c7_148 = arith.constant 7 : index
    %c0_149 = arith.constant 0 : index
    %278 = vector.load %arg3[%c0_147, %c7_148, %c0_149] : memref<1x8x256xf32, #tpu.memory_space<vmem>>, vector<1x1x256xf32>
    %279 = vector.shape_cast %278 : vector<1x1x256xf32> to vector<256xf32>
    %280 = arith.addf %277, %279 : vector<256xf32>
    %cst_150 = arith.constant 0.000000e+00 : f32
    %cst_151 = arith.constant 1.000000e+00 : f32
    %281 = vector.broadcast %cst_150 : f32 to vector<256xf32>
    %282 = arith.maximumf %281, %280 : vector<256xf32>
    %283 = vector.broadcast %cst_151 : f32 to vector<256xf32>
    %284 = arith.minimumf %283, %282 : vector<256xf32>
    %c0_152 = arith.constant 0 : index
    %c7_153 = arith.constant 7 : index
    %c0_154 = arith.constant 0 : index
    %285 = vector.load %arg9[%c0_152, %c7_153, %c0_154] : memref<1x8x256xf32, #tpu.memory_space<vmem>>, vector<1x1x256xf32>
    %286 = vector.shape_cast %285 : vector<1x1x256xf32> to vector<256xf32>
    %287 = vector.shape_cast %284 : vector<256xf32> to vector<1x1x256xf32>
    tpu.vector_store %arg9[%c0_152, %c7_153, %c0_154], %287 {strides = array<i32>} : memref<1x8x256xf32, #tpu.memory_space<vmem>>, vector<1x1x256xf32>,
    %c0_155 = arith.constant 0 : index
    %c0_156 = arith.constant 0 : index
    %288 = memref.load %arg6[%c0_155, %c0_156] : memref<8x4xf32, #tpu.memory_space<smem>>
    %289 = vector.broadcast %288 : f32 to vector<256xf32>
    %290 = arith.mulf %289, %39 : vector<256xf32>
    %c1_157 = arith.constant 1 : index
    %c0_158 = arith.constant 0 : index
    %291 = memref.load %arg6[%c1_157, %c0_158] : memref<8x4xf32, #tpu.memory_space<smem>>
    %292 = vector.broadcast %291 : f32 to vector<256xf32>
    %293 = arith.mulf %292, %74 : vector<256xf32>
    %294 = arith.addf %290, %293 : vector<256xf32>
    %c2_159 = arith.constant 2 : index
    %c0_160 = arith.constant 0 : index
    %295 = memref.load %arg6[%c2_159, %c0_160] : memref<8x4xf32, #tpu.memory_space<smem>>
    %296 = vector.broadcast %295 : f32 to vector<256xf32>
    %297 = arith.mulf %296, %109 : vector<256xf32>
    %298 = arith.addf %294, %297 : vector<256xf32>
    %c3_161 = arith.constant 3 : index
    %c0_162 = arith.constant 0 : index
    %299 = memref.load %arg6[%c3_161, %c0_162] : memref<8x4xf32, #tpu.memory_space<smem>>
    %300 = vector.broadcast %299 : f32 to vector<256xf32>
    %301 = arith.mulf %300, %144 : vector<256xf32>
    %302 = arith.addf %298, %301 : vector<256xf32>
    %c4_163 = arith.constant 4 : index
    %c0_164 = arith.constant 0 : index
    %303 = memref.load %arg6[%c4_163, %c0_164] : memref<8x4xf32, #tpu.memory_space<smem>>
    %304 = vector.broadcast %303 : f32 to vector<256xf32>
    %305 = arith.mulf %304, %179 : vector<256xf32>
    %306 = arith.addf %302, %305 : vector<256xf32>
    %c5_165 = arith.constant 5 : index
    %c0_166 = arith.constant 0 : index
    %307 = memref.load %arg6[%c5_165, %c0_166] : memref<8x4xf32, #tpu.memory_space<smem>>
    %308 = vector.broadcast %307 : f32 to vector<256xf32>
    %309 = arith.mulf %308, %214 : vector<256xf32>
    %310 = arith.addf %306, %309 : vector<256xf32>
    %c6_167 = arith.constant 6 : index
    %c0_168 = arith.constant 0 : index
    %311 = memref.load %arg6[%c6_167, %c0_168] : memref<8x4xf32, #tpu.memory_space<smem>>
    %312 = vector.broadcast %311 : f32 to vector<256xf32>
    %313 = arith.mulf %312, %249 : vector<256xf32>
    %314 = arith.addf %310, %313 : vector<256xf32>
    %c7_169 = arith.constant 7 : index
    %c0_170 = arith.constant 0 : index
    %315 = memref.load %arg6[%c7_169, %c0_170] : memref<8x4xf32, #tpu.memory_space<smem>>
    %316 = vector.broadcast %315 : f32 to vector<256xf32>
    %317 = arith.mulf %316, %284 : vector<256xf32>
    %318 = arith.addf %314, %317 : vector<256xf32>
    %c0_171 = arith.constant 0 : index
    %319 = memref.load %arg7[%c0_171] : memref<4xf32, #tpu.memory_space<smem>>
    %320 = vector.broadcast %319 : f32 to vector<256xf32>
    %321 = arith.addf %318, %320 : vector<256xf32>
    %c0_172 = arith.constant 0 : index
    %c0_173 = arith.constant 0 : index
    %c0_174 = arith.constant 0 : index
    %322 = vector.load %arg8[%c0_172, %c0_173, %c0_174] : memref<1x4x256xf32, #tpu.memory_space<vmem>>, vector<1x1x256xf32>
    %323 = vector.shape_cast %322 : vector<1x1x256xf32> to vector<256xf32>
    %324 = vector.shape_cast %321 : vector<256xf32> to vector<1x1x256xf32>
    tpu.vector_store %arg8[%c0_172, %c0_173, %c0_174], %324 {strides = array<i32>} : memref<1x4x256xf32, #tpu.memory_space<vmem>>, vector<1x1x256xf32>,
    %c0_175 = arith.constant 0 : index
    %c1_176 = arith.constant 1 : index
    %325 = memref.load %arg6[%c0_175, %c1_176] : memref<8x4xf32, #tpu.memory_space<smem>>
    %326 = vector.broadcast %325 : f32 to vector<256xf32>
    %327 = arith.mulf %326, %39 : vector<256xf32>
    %c1_177 = arith.constant 1 : index
    %c1_178 = arith.constant 1 : index
    %328 = memref.load %arg6[%c1_177, %c1_178] : memref<8x4xf32, #tpu.memory_space<smem>>
    %329 = vector.broadcast %328 : f32 to vector<256xf32>
    %330 = arith.mulf %329, %74 : vector<256xf32>
    %331 = arith.addf %327, %330 : vector<256xf32>
    %c2_179 = arith.constant 2 : index
    %c1_180 = arith.constant 1 : index
    %332 = memref.load %arg6[%c2_179, %c1_180] : memref<8x4xf32, #tpu.memory_space<smem>>
    %333 = vector.broadcast %332 : f32 to vector<256xf32>
    %334 = arith.mulf %333, %109 : vector<256xf32>
    %335 = arith.addf %331, %334 : vector<256xf32>
    %c3_181 = arith.constant 3 : index
    %c1_182 = arith.constant 1 : index
    %336 = memref.load %arg6[%c3_181, %c1_182] : memref<8x4xf32, #tpu.memory_space<smem>>
    %337 = vector.broadcast %336 : f32 to vector<256xf32>
    %338 = arith.mulf %337, %144 : vector<256xf32>
    %339 = arith.addf %335, %338 : vector<256xf32>
    %c4_183 = arith.constant 4 : index
    %c1_184 = arith.constant 1 : index
    %340 = memref.load %arg6[%c4_183, %c1_184] : memref<8x4xf32, #tpu.memory_space<smem>>
    %341 = vector.broadcast %340 : f32 to vector<256xf32>
    %342 = arith.mulf %341, %179 : vector<256xf32>
    %343 = arith.addf %339, %342 : vector<256xf32>
    %c5_185 = arith.constant 5 : index
    %c1_186 = arith.constant 1 : index
    %344 = memref.load %arg6[%c5_185, %c1_186] : memref<8x4xf32, #tpu.memory_space<smem>>
    %345 = vector.broadcast %344 : f32 to vector<256xf32>
    %346 = arith.mulf %345, %214 : vector<256xf32>
    %347 = arith.addf %343, %346 : vector<256xf32>
    %c6_187 = arith.constant 6 : index
    %c1_188 = arith.constant 1 : index
    %348 = memref.load %arg6[%c6_187, %c1_188] : memref<8x4xf32, #tpu.memory_space<smem>>
    %349 = vector.broadcast %348 : f32 to vector<256xf32>
    %350 = arith.mulf %349, %249 : vector<256xf32>
    %351 = arith.addf %347, %350 : vector<256xf32>
    %c7_189 = arith.constant 7 : index
    %c1_190 = arith.constant 1 : index
    %352 = memref.load %arg6[%c7_189, %c1_190] : memref<8x4xf32, #tpu.memory_space<smem>>
    %353 = vector.broadcast %352 : f32 to vector<256xf32>
    %354 = arith.mulf %353, %284 : vector<256xf32>
    %355 = arith.addf %351, %354 : vector<256xf32>
    %c1_191 = arith.constant 1 : index
    %356 = memref.load %arg7[%c1_191] : memref<4xf32, #tpu.memory_space<smem>>
    %357 = vector.broadcast %356 : f32 to vector<256xf32>
    %358 = arith.addf %355, %357 : vector<256xf32>
    %c0_192 = arith.constant 0 : index
    %c1_193 = arith.constant 1 : index
    %c0_194 = arith.constant 0 : index
    %359 = vector.load %arg8[%c0_192, %c1_193, %c0_194] : memref<1x4x256xf32, #tpu.memory_space<vmem>>, vector<1x1x256xf32>
    %360 = vector.shape_cast %359 : vector<1x1x256xf32> to vector<256xf32>
    %361 = vector.shape_cast %358 : vector<256xf32> to vector<1x1x256xf32>
    tpu.vector_store %arg8[%c0_192, %c1_193, %c0_194], %361 {strides = array<i32>} : memref<1x4x256xf32, #tpu.memory_space<vmem>>, vector<1x1x256xf32>,
    %c0_195 = arith.constant 0 : index
    %c2_196 = arith.constant 2 : index
    %362 = memref.load %arg6[%c0_195, %c2_196] : memref<8x4xf32, #tpu.memory_space<smem>>
    %363 = vector.broadcast %362 : f32 to vector<256xf32>
    %364 = arith.mulf %363, %39 : vector<256xf32>
    %c1_197 = arith.constant 1 : index
    %c2_198 = arith.constant 2 : index
    %365 = memref.load %arg6[%c1_197, %c2_198] : memref<8x4xf32, #tpu.memory_space<smem>>
    %366 = vector.broadcast %365 : f32 to vector<256xf32>
    %367 = arith.mulf %366, %74 : vector<256xf32>
    %368 = arith.addf %364, %367 : vector<256xf32>
    %c2_199 = arith.constant 2 : index
    %c2_200 = arith.constant 2 : index
    %369 = memref.load %arg6[%c2_199, %c2_200] : memref<8x4xf32, #tpu.memory_space<smem>>
    %370 = vector.broadcast %369 : f32 to vector<256xf32>
    %371 = arith.mulf %370, %109 : vector<256xf32>
    %372 = arith.addf %368, %371 : vector<256xf32>
    %c3_201 = arith.constant 3 : index
    %c2_202 = arith.constant 2 : index
    %373 = memref.load %arg6[%c3_201, %c2_202] : memref<8x4xf32, #tpu.memory_space<smem>>
    %374 = vector.broadcast %373 : f32 to vector<256xf32>
    %375 = arith.mulf %374, %144 : vector<256xf32>
    %376 = arith.addf %372, %375 : vector<256xf32>
    %c4_203 = arith.constant 4 : index
    %c2_204 = arith.constant 2 : index
    %377 = memref.load %arg6[%c4_203, %c2_204] : memref<8x4xf32, #tpu.memory_space<smem>>
    %378 = vector.broadcast %377 : f32 to vector<256xf32>
    %379 = arith.mulf %378, %179 : vector<256xf32>
    %380 = arith.addf %376, %379 : vector<256xf32>
    %c5_205 = arith.constant 5 : index
    %c2_206 = arith.constant 2 : index
    %381 = memref.load %arg6[%c5_205, %c2_206] : memref<8x4xf32, #tpu.memory_space<smem>>
    %382 = vector.broadcast %381 : f32 to vector<256xf32>
    %383 = arith.mulf %382, %214 : vector<256xf32>
    %384 = arith.addf %380, %383 : vector<256xf32>
    %c6_207 = arith.constant 6 : index
    %c2_208 = arith.constant 2 : index
    %385 = memref.load %arg6[%c6_207, %c2_208] : memref<8x4xf32, #tpu.memory_space<smem>>
    %386 = vector.broadcast %385 : f32 to vector<256xf32>
    %387 = arith.mulf %386, %249 : vector<256xf32>
    %388 = arith.addf %384, %387 : vector<256xf32>
    %c7_209 = arith.constant 7 : index
    %c2_210 = arith.constant 2 : index
    %389 = memref.load %arg6[%c7_209, %c2_210] : memref<8x4xf32, #tpu.memory_space<smem>>
    %390 = vector.broadcast %389 : f32 to vector<256xf32>
    %391 = arith.mulf %390, %284 : vector<256xf32>
    %392 = arith.addf %388, %391 : vector<256xf32>
    %c2_211 = arith.constant 2 : index
    %393 = memref.load %arg7[%c2_211] : memref<4xf32, #tpu.memory_space<smem>>
    %394 = vector.broadcast %393 : f32 to vector<256xf32>
    %395 = arith.addf %392, %394 : vector<256xf32>
    %c0_212 = arith.constant 0 : index
    %c2_213 = arith.constant 2 : index
    %c0_214 = arith.constant 0 : index
    %396 = vector.load %arg8[%c0_212, %c2_213, %c0_214] : memref<1x4x256xf32, #tpu.memory_space<vmem>>, vector<1x1x256xf32>
    %397 = vector.shape_cast %396 : vector<1x1x256xf32> to vector<256xf32>
    %398 = vector.shape_cast %395 : vector<256xf32> to vector<1x1x256xf32>
    tpu.vector_store %arg8[%c0_212, %c2_213, %c0_214], %398 {strides = array<i32>} : memref<1x4x256xf32, #tpu.memory_space<vmem>>, vector<1x1x256xf32>,
    %c0_215 = arith.constant 0 : index
    %c3_216 = arith.constant 3 : index
    %399 = memref.load %arg6[%c0_215, %c3_216] : memref<8x4xf32, #tpu.memory_space<smem>>
    %400 = vector.broadcast %399 : f32 to vector<256xf32>
    %401 = arith.mulf %400, %39 : vector<256xf32>
    %c1_217 = arith.constant 1 : index
    %c3_218 = arith.constant 3 : index
    %402 = memref.load %arg6[%c1_217, %c3_218] : memref<8x4xf32, #tpu.memory_space<smem>>
    %403 = vector.broadcast %402 : f32 to vector<256xf32>
    %404 = arith.mulf %403, %74 : vector<256xf32>
    %405 = arith.addf %401, %404 : vector<256xf32>
    %c2_219 = arith.constant 2 : index
    %c3_220 = arith.constant 3 : index
    %406 = memref.load %arg6[%c2_219, %c3_220] : memref<8x4xf32, #tpu.memory_space<smem>>
    %407 = vector.broadcast %406 : f32 to vector<256xf32>
    %408 = arith.mulf %407, %109 : vector<256xf32>
    %409 = arith.addf %405, %408 : vector<256xf32>
    %c3_221 = arith.constant 3 : index
    %c3_222 = arith.constant 3 : index
    %410 = memref.load %arg6[%c3_221, %c3_222] : memref<8x4xf32, #tpu.memory_space<smem>>
    %411 = vector.broadcast %410 : f32 to vector<256xf32>
    %412 = arith.mulf %411, %144 : vector<256xf32>
    %413 = arith.addf %409, %412 : vector<256xf32>
    %c4_223 = arith.constant 4 : index
    %c3_224 = arith.constant 3 : index
    %414 = memref.load %arg6[%c4_223, %c3_224] : memref<8x4xf32, #tpu.memory_space<smem>>
    %415 = vector.broadcast %414 : f32 to vector<256xf32>
    %416 = arith.mulf %415, %179 : vector<256xf32>
    %417 = arith.addf %413, %416 : vector<256xf32>
    %c5_225 = arith.constant 5 : index
    %c3_226 = arith.constant 3 : index
    %418 = memref.load %arg6[%c5_225, %c3_226] : memref<8x4xf32, #tpu.memory_space<smem>>
    %419 = vector.broadcast %418 : f32 to vector<256xf32>
    %420 = arith.mulf %419, %214 : vector<256xf32>
    %421 = arith.addf %417, %420 : vector<256xf32>
    %c6_227 = arith.constant 6 : index
    %c3_228 = arith.constant 3 : index
    %422 = memref.load %arg6[%c6_227, %c3_228] : memref<8x4xf32, #tpu.memory_space<smem>>
    %423 = vector.broadcast %422 : f32 to vector<256xf32>
    %424 = arith.mulf %423, %249 : vector<256xf32>
    %425 = arith.addf %421, %424 : vector<256xf32>
    %c7_229 = arith.constant 7 : index
    %c3_230 = arith.constant 3 : index
    %426 = memref.load %arg6[%c7_229, %c3_230] : memref<8x4xf32, #tpu.memory_space<smem>>
    %427 = vector.broadcast %426 : f32 to vector<256xf32>
    %428 = arith.mulf %427, %284 : vector<256xf32>
    %429 = arith.addf %425, %428 : vector<256xf32>
    %c3_231 = arith.constant 3 : index
    %430 = memref.load %arg7[%c3_231] : memref<4xf32, #tpu.memory_space<smem>>
    %431 = vector.broadcast %430 : f32 to vector<256xf32>
    %432 = arith.addf %429, %431 : vector<256xf32>
    %c0_232 = arith.constant 0 : index
    %c3_233 = arith.constant 3 : index
    %c0_234 = arith.constant 0 : index
    %433 = vector.load %arg8[%c0_232, %c3_233, %c0_234] : memref<1x4x256xf32, #tpu.memory_space<vmem>>, vector<1x1x256xf32>
    %434 = vector.shape_cast %433 : vector<1x1x256xf32> to vector<256xf32>
    %435 = vector.shape_cast %432 : vector<256xf32> to vector<1x1x256xf32>
    tpu.vector_store %arg8[%c0_232, %c3_233, %c0_234], %435 {strides = array<i32>} : memref<1x4x256xf32, #tpu.memory_space<vmem>>, vector<1x1x256xf32>,
    return
  }
  func.func @transform_0(%arg0: i32, %arg1: i32) -> (i32, i32, i32) {
    %c0_i32 = arith.constant 0 : i32
    %c0_i32_0 = arith.constant 0 : i32
    return %arg0, %c0_i32, %arg1 : i32, i32, i32
  }
  func.func @transform_1(%arg0: i32, %arg1: i32) -> (i32, i32, i32) {
    %c0_i32 = arith.constant 0 : i32
    %c0_i32_0 = arith.constant 0 : i32
    return %arg0, %c0_i32, %arg1 : i32, i32, i32
  }
  func.func @transform_2(%arg0: i32, %arg1: i32) -> (i32, i32) {
    %c0_i32 = arith.constant 0 : i32
    %c0_i32_0 = arith.constant 0 : i32
    %c0_i32_1 = arith.constant 0 : i32
    return %c0_i32, %c0_i32_0 : i32, i32
  }
  func.func @transform_3(%arg0: i32, %arg1: i32) -> i32 {
    %c0_i32 = arith.constant 0 : i32
    %c0_i32_0 = arith.constant 0 : i32
    return %c0_i32 : i32
  }
  func.func @transform_4(%arg0: i32, %arg1: i32) -> (i32, i32) {
    %c0_i32 = arith.constant 0 : i32
    %c0_i32_0 = arith.constant 0 : i32
    %c0_i32_1 = arith.constant 0 : i32
    return %c0_i32, %c0_i32_0 : i32, i32
  }
  func.func @transform_5(%arg0: i32, %arg1: i32) -> i32 {
    %c0_i32 = arith.constant 0 : i32
    %c0_i32_0 = arith.constant 0 : i32
    return %c0_i32 : i32
  }
  func.func @transform_6(%arg0: i32, %arg1: i32) -> (i32, i32, i32) {
    %c0_i32 = arith.constant 0 : i32
    %c0_i32_0 = arith.constant 0 : i32
    return %arg0, %c0_i32, %arg1 : i32, i32, i32
  }
  func.func @transform_7(%arg0: i32, %arg1: i32) -> (i32, i32, i32) {
    %c0_i32 = arith.constant 0 : i32
    %c0_i32_0 = arith.constant 0 : i32
    return %arg0, %c0_i32, %arg1 : i32, i32, i32
  }
}

</mosaic_0001>

<llo_original>
// kernel: tpu_custom_call.1
$region0: #{tpu_custom_call.1}
  #allocation0 [shape = 'u32[]', space=smem, size = 0x4, offset = 0x4, fixed_abs, tag = 'smem constant byte address 0x4 - core index']
  #allocation1 [shape = 'u32[144,128]{1,0:T(1,128)}', space=vmem, size = 0x12000, scoped, tag = 'internal scratch']
  %s0 = inlined_call_operand.hbm [shape: f32[2,4,256], index: 0, kind: input, shape index: {}]
  %s1 = inlined_call_operand.hbm [shape: f32[2,8,256], index: 1, kind: input, shape index: {}]
  %s2 = inlined_call_operand.vmem [shape: f32[4,8], index: 2, kind: input, shape index: {}]
  %s3 = inlined_call_operand.vmem [shape: f32[8], index: 3, kind: input, shape index: {}]
  %s4 = inlined_call_operand.vmem [shape: f32[8,4], index: 4, kind: input, shape index: {}]
  %s5 = inlined_call_operand.vmem [shape: f32[4], index: 5, kind: input, shape index: {}]
  %s6 = inlined_call_operand.hbm [shape: f32[2,4,256], index: 6, kind: output, shape index: {0}]
  %s7 = inlined_call_operand.hbm [shape: f32[2,8,256], index: 7, kind: output, shape index: {1}]
  %8 = xla_tuple %s6, %s7
  %s9 = sld [smem:[#allocation0]]
  $region89: #{tpu_custom_call.1} parent=0
    _
  %s11 = ssub.s32 1, %s9
  %s12 = scalar_select 0, %s11, %s9
  $region1: #{tpu_custom_call.1} parent=0
    #allocation2 [shape = 'u8[8192]{0}', space=vmem, size = 0x2000, scoped, tag = 'input window, operand 0']
    #allocation3 [shape = 's32[2]{0}', space=sflag, size = 0x8, scoped, tag = 'scoped memory for tpu_custom_call.1']
    #allocation4 [shape = 's32[2]{0}', space=sflag, size = 0x8, scoped, tag = 'scoped memory for tpu_custom_call.1']
    #allocation5 [shape = 's32[2]{0}', space=sflag, size = 0x8, scoped, tag = 'scoped memory for tpu_custom_call.1']
    #allocation6 [shape = 'u8[16384]{0}', space=vmem, size = 0x4000, scoped, tag = 'input window, operand 1']
    #allocation7 [shape = 's32[2]{0}', space=sflag, size = 0x8, scoped, tag = 'scoped memory for tpu_custom_call.1']
    #allocation8 [shape = 'u8[2048]{0}', space=smem, size = 0x800, scoped, tag = 'input window, operand 2, single buffered']
    #allocation9 [shape = 'u8[512]{0}', space=smem, size = 0x200, scoped, tag = 'input window, operand 3, single buffered']
    #allocation10 [shape = 's32[1]{0}', space=sflag, size = 0x4, scoped, tag = 'scoped memory for tpu_custom_call.1']
    #allocation11 [shape = 'u8[4096]{0}', space=smem, size = 0x1000, scoped, tag = 'input window, operand 4, single buffered']
    #allocation12 [shape = 'u8[512]{0}', space=smem, size = 0x200, scoped, tag = 'input window, operand 5, single buffered']
    #allocation13 [shape = 's32[1]{0}', space=sflag, size = 0x4, scoped, tag = 'scoped memory for tpu_custom_call.1']
    #allocation14 [shape = 'u8[8192]{0}', space=vmem, size = 0x2000, scoped, tag = 'output window, operand 0']
    #allocation15 [shape = 'u8[16384]{0}', space=vmem, size = 0x4000, scoped, tag = 'output window, operand 1']
    #allocation16 [shape = 's32[2]{0}', space=sflag, size = 0x8, scoped, tag = 'scoped memory for tpu_custom_call.1']
    %13 = vsyncpa [#allocation3], 0
    %s14 = scalar_lea.sflag [#allocation3], 1
    %15 = vsyncpa %s14, 0
    %16 = vsyncpa [#allocation7], 0
    %s17 = scalar_lea.sflag [#allocation7], 1
    %18 = vsyncpa %s17, 0
    %19 = vsyncpa [#allocation5], 0
    %20 = vsyncpa [#allocation10], 0
    %21 = vsyncpa [#allocation13], 0
    %22 = vsyncpa [#allocation4], 0
    %s23 = scalar_lea.sflag [#allocation4], 1
    %24 = vsyncpa %s23, 0
    %25 = vsyncpa [#allocation16], 0
    %s26 = scalar_lea.sflag [#allocation16], 1
    %27 = vsyncpa %s26, 0
    loop: start=0, step=1, limit=4
    $region2: #{tpu_custom_call.1} parent=1 // loop_pre_header
      _
    $region3: #{tpu_custom_call.1} parent=1 // loop_header
      %s29 = sphi 0, %s33
      %p30 = scmp.ge.s32.totalorder %s29, 4
      %s36 = sphi 0, %s48
      %s37 = sphi 0, %s44
      %s38 = sphi 0, %s36
      %s39 = sphi 0, %s37
      %s40 = sphi 0, %s38
      %s41 = sphi 0, %s39
      %s53 = sphi 0, %s55
      %s56 = sphi 0, %s53
      %s57 = sphi 0, %s56
      %s73 = sphi 0, %s57
      %s81 = sphi 0, %s83
      %s84 = sphi 0, %s81
      %s85 = sphi 0, %s84
      %s101 = sphi 0, %s85
      %s105 = sphi 0, %s105
      %s107 = sphi 0, %s105
      %s108 = sphi 0, %s107
      %s122 = sphi 0, %s108
      %s126 = sphi 0, %s126
      %s128 = sphi 0, %s126
      %s129 = sphi 0, %s128
      %s143 = sphi 0, %s129
      %s147 = sphi 0, %s147
      %s149 = sphi 0, %s147
      %s150 = sphi 0, %s149
      %s164 = sphi 0, %s150
      %s168 = sphi 0, %s168
      %s170 = sphi 0, %s168
      %s171 = sphi 0, %s170
      %s185 = sphi 0, %s171
      %s193 = sphi 0, %s195
      %s196 = sphi 0, %s193
      %s197 = sphi 0, %s196
      %s213 = sphi 0, %s197
      %s221 = sphi 0, %s223
      %s224 = sphi 0, %s221
      %s225 = sphi 0, %s224
      %s241 = sphi 0, %s225
    $region4: #{tpu_custom_call.1} parent=1 // loop_header_branch
      %32 = sbr.rel (%p30) target = $region8
    $region5: #{tpu_custom_call.1} parent=1 // loop_body
      %s34 = ssub.s32 %s29, 1
      %s35 = ssub.s32 %s29, 2
      %s42 = sadd.s32 1, %s37
      %p43 = scmp.ge.s32.totalorder %s42, 1
      %s44 = scalar_select %p43, 0, %s42
      %s45 = sadd.s32 1, %s36
      %s46 = scalar_select %p43, %s45, %s36
      %p47 = scmp.ge.s32.totalorder %s46, 2
      %s48 = scalar_select %p47, 0, %s46
      %s49 = ssub.s32 %s36, %s48
      %s50 = ssub.s32 %s37, %s44
      %s51 = sor.u32 %s49, %s50
      %p52 = scmp.eq.s32.totalorder %s51, 0
      %s54 = sadd.s32 %s53, 1
      %s55 = scalar_select %p52, %s53, %s54
      %p58 = pneg %p52
      %p59 = scmp.eq.s32.totalorder %s29, 1
      %p60 = por %p58, %p59
      %p61 = scmp.ne.s32.totalorder %s53, %s56
      %p62 = scmp.eq.s32.totalorder %s29, 0
      %p63 = por %p61, %p62
      %p64 = scmp.ne.s32.totalorder %s53, %s56
      %p65 = scmp.eq.s32.totalorder %s34, 1
      %p66 = por %p64, %p65
      %p67 = scmp.ne.s32.totalorder %s56, %s57
      %p68 = scmp.eq.s32.totalorder %s34, 0
      %p69 = por %p67, %p68
      %p70 = scmp.ne.s32.totalorder %s56, %s57
      %p71 = scmp.eq.s32.totalorder %s35, 1
      %p72 = por %p70, %p71
      %p74 = scmp.ne.s32.totalorder %s57, %s73
      %p75 = scmp.eq.s32.totalorder %s35, 0
      %p76 = por %p74, %p75
      %s77 = ssub.s32 %s36, %s48
      %s78 = ssub.s32 %s37, %s44
      %s79 = sor.u32 %s77, %s78
      %p80 = scmp.eq.s32.totalorder %s79, 0
      %s82 = sadd.s32 %s81, 1
      %s83 = scalar_select %p80, %s81, %s82
      %p86 = pneg %p80
      %p87 = scmp.eq.s32.totalorder %s29, 1
      %p88 = por %p86, %p87
      %p89 = scmp.ne.s32.totalorder %s81, %s84
      %p90 = scmp.eq.s32.totalorder %s29, 0
      %p91 = por %p89, %p90
      %p92 = scmp.ne.s32.totalorder %s81, %s84
      %p93 = scmp.eq.s32.totalorder %s34, 1
      %p94 = por %p92, %p93
      %p95 = scmp.ne.s32.totalorder %s84, %s85
      %p96 = scmp.eq.s32.totalorder %s34, 0
      %p97 = por %p95, %p96
      %p98 = scmp.ne.s32.totalorder %s84, %s85
      %p99 = scmp.eq.s32.totalorder %s35, 1
      %p100 = por %p98, %p99
      %p102 = scmp.ne.s32.totalorder %s85, %s101
      %p103 = scmp.eq.s32.totalorder %s35, 0
      %p104 = por %p102, %p103
      %s106 = sadd.s32 %s105, 1
      %p109 = scmp.eq.s32.totalorder %s29, 1
      %p110 = scmp.ne.s32.totalorder %s105, %s107
      %p111 = scmp.eq.s32.totalorder %s29, 0
      %p112 = por %p110, %p111
      %p113 = scmp.ne.s32.totalorder %s105, %s107
      %p114 = scmp.eq.s32.totalorder %s34, 1
      %p115 = por %p113, %p114
      %p116 = scmp.ne.s32.totalorder %s107, %s108
      %p117 = scmp.eq.s32.totalorder %s34, 0
      %p118 = por %p116, %p117
      %p119 = scmp.ne.s32.totalorder %s107, %s108
      %p120 = scmp.eq.s32.totalorder %s35, 1
      %p121 = por %p119, %p120
      %p123 = scmp.ne.s32.totalorder %s108, %s122
      %p124 = scmp.eq.s32.totalorder %s35, 0
      %p125 = por %p123, %p124
      %s127 = sadd.s32 %s126, 1
      %p130 = scmp.eq.s32.totalorder %s29, 1
      %p131 = scmp.ne.s32.totalorder %s126, %s128
      %p132 = scmp.eq.s32.totalorder %s29, 0
      %p133 = por %p131, %p132
      %p134 = scmp.ne.s32.totalorder %s126, %s128
      %p135 = scmp.eq.s32.totalorder %s34, 1
      %p136 = por %p134, %p135
      %p137 = scmp.ne.s32.totalorder %s128, %s129
      %p138 = scmp.eq.s32.totalorder %s34, 0
      %p139 = por %p137, %p138
      %p140 = scmp.ne.s32.totalorder %s128, %s129
      %p141 = scmp.eq.s32.totalorder %s35, 1
      %p142 = por %p140, %p141
      %p144 = scmp.ne.s32.totalorder %s129, %s143
      %p145 = scmp.eq.s32.totalorder %s35, 0
      %p146 = por %p144, %p145
      %s148 = sadd.s32 %s147, 1
      %p151 = scmp.eq.s32.totalorder %s29, 1
      %p152 = scmp.ne.s32.totalorder %s147, %s149
      %p153 = scmp.eq.s32.totalorder %s29, 0
      %p154 = por %p152, %p153
      %p155 = scmp.ne.s32.totalorder %s147, %s149
      %p156 = scmp.eq.s32.totalorder %s34, 1
      %p157 = por %p155, %p156
      %p158 = scmp.ne.s32.totalorder %s149, %s150
      %p159 = scmp.eq.s32.totalorder %s34, 0
      %p160 = por %p158, %p159
      %p161 = scmp.ne.s32.totalorder %s149, %s150
      %p162 = scmp.eq.s32.totalorder %s35, 1
      %p163 = por %p161, %p162
      %p165 = scmp.ne.s32.totalorder %s150, %s164
      %p166 = scmp.eq.s32.totalorder %s35, 0
      %p167 = por %p165, %p166
      %s169 = sadd.s32 %s168, 1
      %p172 = scmp.eq.s32.totalorder %s29, 1
      %p173 = scmp.ne.s32.totalorder %s168, %s170
      %p174 = scmp.eq.s32.totalorder %s29, 0
      %p175 = por %p173, %p174
      %p176 = scmp.ne.s32.totalorder %s168, %s170
      %p177 = scmp.eq.s32.totalorder %s34, 1
      %p178 = por %p176, %p177
      %p179 = scmp.ne.s32.totalorder %s170, %s171
      %p180 = scmp.eq.s32.totalorder %s34, 0
      %p181 = por %p179, %p180
      %p182 = scmp.ne.s32.totalorder %s170, %s171
      %p183 = scmp.eq.s32.totalorder %s35, 1
      %p184 = por %p182, %p183
      %p186 = scmp.ne.s32.totalorder %s171, %s185
      %p187 = scmp.eq.s32.totalorder %s35, 0
      %p188 = por %p186, %p187
      %s189 = ssub.s32 %s36, %s48
      %s190 = ssub.s32 %s37, %s44
      %s191 = sor.u32 %s189, %s190
      %p192 = scmp.eq.s32.totalorder %s191, 0
      %s194 = sadd.s32 %s193, 1
      %s195 = scalar_select %p192, %s193, %s194
      %p198 = pneg %p192
      %p199 = scmp.eq.s32.totalorder %s29, 1
      %p200 = por %p198, %p199
      %p201 = scmp.ne.s32.totalorder %s193, %s196
      %p202 = scmp.eq.s32.totalorder %s29, 0
      %p203 = por %p201, %p202
      %p204 = scmp.ne.s32.totalorder %s193, %s196
      %p205 = scmp.eq.s32.totalorder %s34, 1
      %p206 = por %p204, %p205
      %p207 = scmp.ne.s32.totalorder %s196, %s197
      %p208 = scmp.eq.s32.totalorder %s34, 0
      %p209 = por %p207, %p208
      %p210 = scmp.ne.s32.totalorder %s196, %s197
      %p211 = scmp.eq.s32.totalorder %s35, 1
      %p212 = por %p210, %p211
      %p214 = scmp.ne.s32.totalorder %s197, %s213
      %p215 = scmp.eq.s32.totalorder %s35, 0
      %p216 = por %p214, %p215
      %s217 = ssub.s32 %s36, %s48
      %s218 = ssub.s32 %s37, %s44
      %s219 = sor.u32 %s217, %s218
      %p220 = scmp.eq.s32.totalorder %s219, 0
      %s222 = sadd.s32 %s221, 1
      %s223 = scalar_select %p220, %s221, %s222
      %p226 = pneg %p220
      %p227 = scmp.eq.s32.totalorder %s29, 1
      %p228 = por %p226, %p227
      %p229 = scmp.ne.s32.totalorder %s221, %s224
      %p230 = scmp.eq.s32.totalorder %s29, 0
      %p231 = por %p229, %p230
      %p232 = scmp.ne.s32.totalorder %s221, %s224
      %p233 = scmp.eq.s32.totalorder %s34, 1
      %p234 = por %p232, %p233
      %p235 = scmp.ne.s32.totalorder %s224, %s225
      %p236 = scmp.eq.s32.totalorder %s34, 0
      %p237 = por %p235, %p236
      %p238 = scmp.ne.s32.totalorder %s224, %s225
      %p239 = scmp.eq.s32.totalorder %s35, 1
      %p240 = por %p238, %p239
      %p242 = scmp.ne.s32.totalorder %s225, %s241
      %p243 = scmp.eq.s32.totalorder %s35, 0
      %p244 = por %p242, %p243
      %p245 = scmp.le.s32.totalorder 1, %s29
      %p246 = scmp.lt.s32.totalorder %s29, 3
      %p247 = pnand %p245, %p246
      %p248 = pneg %p247
      // Predicated region
      $region9: #{tpu_custom_call.1} parent=5 // pred_check
        _
      $region10: #{tpu_custom_call.1} parent=5 // pred_check_branch
        %250 = sbr.rel (%p247) target = $region12
      $region11: #{tpu_custom_call.1} parent=5 // pred_region
        %s251 = ssub.s32 %s29, 1
        // Predicated region
        $region13: #{tpu_custom_call.1} parent=11 // pred_check
          %p252 = pneg %p118
        $region14: #{tpu_custom_call.1} parent=11 // pred_check_branch
          %254 = sbr.rel (%p252) target = $region16
        $region15: #{tpu_custom_call.1} parent=11 // pred_region
          %s256 = ssub.s32 64, 64
          %257 = vsyncadd [#allocation5], %s256
          %s259 = sshll.u32 %s2, 4
          %s260 = int_to_ptr.vmem [resolvable:$true] %s259
          %262 = dma.vmem_to_smem %s260, 64, [#allocation8], [#allocation5]
        $region16: #{tpu_custom_call.1} parent=11 // pred_fallthru
          _
        // Predicated region
        $region17: #{tpu_custom_call.1} parent=11 // pred_check
          %p263 = pneg %p139
        $region18: #{tpu_custom_call.1} parent=11 // pred_check_branch
          %265 = sbr.rel (%p263) target = $region20
        $region19: #{tpu_custom_call.1} parent=11 // pred_region
          %s267 = ssub.s32 16, 16
          %268 = vsyncadd [#allocation10], %s267
          %s270 = sshll.u32 %s3, 4
          %s271 = int_to_ptr.vmem [resolvable:$true] %s270
          %273 = dma.vmem_to_smem %s271, 16, [#allocation9], [#allocation10]
        $region20: #{tpu_custom_call.1} parent=11 // pred_fallthru
          _
        // Predicated region
        $region21: #{tpu_custom_call.1} parent=11 // pred_check
          %p274 = pneg %p160
        $region22: #{tpu_custom_call.1} parent=11 // pred_check_branch
          %276 = sbr.rel (%p274) target = $region24
        $region23: #{tpu_custom_call.1} parent=11 // pred_region
          %s278 = ssub.s32 128, 128
          %279 = vsyncadd [#allocation10], %s278
          %s281 = sshll.u32 %s4, 4
          %s282 = int_to_ptr.vmem [resolvable:$true] %s281
          %284 = dma.vmem_to_smem %s282, 128, [#allocation11], [#allocation10]
        $region24: #{tpu_custom_call.1} parent=11 // pred_fallthru
          _
        // Predicated region
        $region25: #{tpu_custom_call.1} parent=11 // pred_check
          %p285 = pneg %p181
        $region26: #{tpu_custom_call.1} parent=11 // pred_check_branch
          %287 = sbr.rel (%p285) target = $region28
        $region27: #{tpu_custom_call.1} parent=11 // pred_region
          %s289 = ssub.s32 16, 16
          %290 = vsyncadd [#allocation13], %s289
          %s292 = sshll.u32 %s5, 4
          %s293 = int_to_ptr.vmem [resolvable:$true] %s292
          %295 = dma.vmem_to_smem %s293, 16, [#allocation12], [#allocation13]
        $region28: #{tpu_custom_call.1} parent=11 // pred_fallthru
          _
      $region12: #{tpu_custom_call.1} parent=5 // pred_fallthru
        _
      %p296 = scmp.lt.s32.totalorder %s29, 2
      // Predicated region
      $region29: #{tpu_custom_call.1} parent=5 // pred_check
        %p297 = pneg %p296
      $region30: #{tpu_custom_call.1} parent=5 // pred_check_branch
        %299 = sbr.rel (%p297) target = $region32
      $region31: #{tpu_custom_call.1} parent=5 // pred_region
        // Predicated region
        $region33: #{tpu_custom_call.1} parent=31 // pred_check
          %p300 = pneg %p63
        $region34: #{tpu_custom_call.1} parent=31 // pred_check_branch
          %302 = sbr.rel (%p300) target = $region36
        $region35: #{tpu_custom_call.1} parent=31 // pred_region
          %s303 = sand.u32 %s53, 1
          %s304 = scalar_lea.sflag [#allocation3], %s303
          %s305 = sand.u32 %s53, 1
          %s306 = smul.addr %s305, 8
          %s307 = scalar_lea.vmem [#allocation2], %s306
          %s308 = smul.u32 2, %s37
          %s310 = ssub.s32 128, 128
          %311 = vsyncadd %s304, %s310
          %s312 = smul.addr %s36, 2
          %s313 = sadd.s32 %s308, %s312
          %s314 = smul.addr %s313, 64
          %s315 = scalar_lea.hbm %s0, %s314
          %s317 = sshll.u32 %s307, 4
          %s318 = int_to_ptr.vmem [resolvable:$true] %s317
          %320 = dma.hbm_to_vmem [thread:$0]  %s315, 128, %s318, %s304
        $region36: #{tpu_custom_call.1} parent=31 // pred_fallthru
          _
        // Predicated region
        $region37: #{tpu_custom_call.1} parent=31 // pred_check
          %p321 = pneg %p91
        $region38: #{tpu_custom_call.1} parent=31 // pred_check_branch
          %323 = sbr.rel (%p321) target = $region40
        $region39: #{tpu_custom_call.1} parent=31 // pred_region
          %s324 = sand.u32 %s81, 1
          %s325 = scalar_lea.sflag [#allocation7], %s324
          %s326 = sand.u32 %s81, 1
          %s327 = smul.addr %s326, 16
          %s328 = scalar_lea.vmem [#allocation6], %s327
          %s329 = smul.u32 2, %s37
          %s331 = ssub.s32 256, 256
          %332 = vsyncadd %s325, %s331
          %s333 = smul.addr %s36, 2
          %s334 = sadd.s32 %s329, %s333
          %s335 = smul.addr %s334, 128
          %s336 = scalar_lea.hbm %s1, %s335
          %s338 = sshll.u32 %s328, 4
          %s339 = int_to_ptr.vmem [resolvable:$true] %s338
          %341 = dma.hbm_to_vmem [thread:$0]  %s336, 256, %s339, %s325
        $region40: #{tpu_custom_call.1} parent=31 // pred_fallthru
          _
      $region32: #{tpu_custom_call.1} parent=5 // pred_fallthru
        _
      %p342 = scmp.le.s32.totalorder 1, %s29
      %p343 = scmp.lt.s32.totalorder %s29, 3
      %p344 = pnand %p342, %p343
      %p345 = pneg %p344
      // Predicated region
      $region41: #{tpu_custom_call.1} parent=5 // pred_check
        _
      $region42: #{tpu_custom_call.1} parent=5 // pred_check_branch
        %347 = sbr.rel (%p344) target = $region44
      $region43: #{tpu_custom_call.1} parent=5 // pred_region
        %s348 = ssub.s32 %s29, 1
        %s349 = sand.u32 %s56, 1
        %s350 = scalar_lea.sflag [#allocation3], %s349
        %s351 = sand.u32 %s56, 1
        %s352 = smul.addr %s351, 8
        %s353 = scalar_lea.vmem [#allocation2], %s352
        // Predicated region
        $region45: #{tpu_custom_call.1} parent=43 // pred_check
          %p354 = pneg %p69
        $region46: #{tpu_custom_call.1} parent=43 // pred_check_branch
          %356 = sbr.rel (%p354) target = $region48
        $region47: #{tpu_custom_call.1} parent=43 // pred_region
          %357 = dma.done %s350, 128
        $region48: #{tpu_custom_call.1} parent=43 // pred_fallthru
          _
        %s358 = sand.u32 %s84, 1
        %s359 = scalar_lea.sflag [#allocation7], %s358
        %s360 = sand.u32 %s84, 1
        %s361 = smul.addr %s360, 16
        %s362 = scalar_lea.vmem [#allocation6], %s361
        // Predicated region
        $region49: #{tpu_custom_call.1} parent=43 // pred_check
          %p363 = pneg %p97
        $region50: #{tpu_custom_call.1} parent=43 // pred_check_branch
          %365 = sbr.rel (%p363) target = $region52
        $region51: #{tpu_custom_call.1} parent=43 // pred_region
          %366 = dma.done %s359, 256
        $region52: #{tpu_custom_call.1} parent=43 // pred_fallthru
          _
        // Predicated region
        $region53: #{tpu_custom_call.1} parent=43 // pred_check
          %p367 = pneg %p118
        $region54: #{tpu_custom_call.1} parent=43 // pred_check_branch
          %369 = sbr.rel (%p367) target = $region56
        $region55: #{tpu_custom_call.1} parent=43 // pred_region
          %370 = dma.done [#allocation5], 64
        $region56: #{tpu_custom_call.1} parent=43 // pred_fallthru
          _
        // Predicated region
        $region57: #{tpu_custom_call.1} parent=43 // pred_check
          %p371 = pneg %p139
        $region58: #{tpu_custom_call.1} parent=43 // pred_check_branch
          %373 = sbr.rel (%p371) target = $region60
        $region59: #{tpu_custom_call.1} parent=43 // pred_region
          %374 = dma.done [#allocation10], 16
        $region60: #{tpu_custom_call.1} parent=43 // pred_fallthru
          _
        // Predicated region
        $region61: #{tpu_custom_call.1} parent=43 // pred_check
          %p375 = pneg %p160
        $region62: #{tpu_custom_call.1} parent=43 // pred_check_branch
          %377 = sbr.rel (%p375) target = $region64
        $region63: #{tpu_custom_call.1} parent=43 // pred_region
          %378 = dma.done [#allocation10], 128
        $region64: #{tpu_custom_call.1} parent=43 // pred_fallthru
          _
        // Predicated region
        $region65: #{tpu_custom_call.1} parent=43 // pred_check
          %p379 = pneg %p181
        $region66: #{tpu_custom_call.1} parent=43 // pred_check_branch
          %381 = sbr.rel (%p379) target = $region68
        $region67: #{tpu_custom_call.1} parent=43 // pred_region
          %382 = dma.done [#allocation13], 16
        $region68: #{tpu_custom_call.1} parent=43 // pred_fallthru
          _
        %383 = sfence
        %s384 = sand.u32 %s56, 1
        %s385 = scalar_lea.sflag [#allocation3], %s384
        %s386 = sand.u32 %s56, 1
        %s387 = smul.addr %s386, 8
        %s388 = scalar_lea.vmem [#allocation2], %s387
        %p389 = pneg %p69
        %p390 = pneg %p66
        %s391 = sand.u32 %s84, 1
        %s392 = scalar_lea.sflag [#allocation7], %s391
        %s393 = sand.u32 %s84, 1
        %s394 = smul.addr %s393, 16
        %s395 = scalar_lea.vmem [#allocation6], %s394
        %p396 = pneg %p97
        %p397 = pneg %p94
        %p398 = pneg %p118
        %p399 = pneg %p115
        %p400 = pneg %p139
        %p401 = pneg %p136
        %p402 = pneg %p160
        %p403 = pneg %p157
        %p404 = pneg %p181
        %p405 = pneg %p178
        %p406 = pneg %p209
        %p407 = pneg %p206
        %s408 = sand.u32 %s196, 1
        %s409 = scalar_lea.sflag [#allocation4], %s408
        %s410 = sand.u32 %s196, 1
        %s411 = smul.addr %s410, 8
        %s412 = scalar_lea.vmem [#allocation14], %s411
        %p413 = pneg %p237
        %p414 = pneg %p234
        %s415 = sand.u32 %s224, 1
        %s416 = scalar_lea.sflag [#allocation16], %s415
        %s417 = sand.u32 %s224, 1
        %s418 = smul.addr %s417, 16
        %s419 = scalar_lea.vmem [#allocation15], %s418
        %s420 = smul.u32 2, %s39
        %s421 = smul.u32 2, %s39
        %s422 = smul.u32 2, %s39
        %s423 = smul.u32 2, %s39
        %v424 = vld [vmem:[%s353] ss:$4 sm:$0x3]
        %s425 = scalar_lea.vmem %s353, 1 [#allocation2]
        %v426 = vld [vmem:[%s425] ss:$4 sm:$0x3]
        %s427 = scalar_lea.vmem %s353, 2 [#allocation2]
        %v428 = vld [vmem:[%s427] ss:$4 sm:$0x3]
        %s429 = scalar_lea.vmem %s353, 3 [#allocation2]
        %v430 = vld [vmem:[%s429] ss:$4 sm:$0x3]
        %s431 = sld [smem:[#allocation8]]
        %v432 = vstv %s431
        %v433 = vmul.f32 %v432, %v424
        %s434 = sld [smem:[#allocation8 + $0x80]]
        %v435 = vstv %s434
        %v436 = vmul.f32 %v435, %v426
        %v437 = vadd.f32 %v433, %v436
        %s438 = sld [smem:[#allocation8 + $0x100]]
        %v439 = vstv %s438
        %v440 = vmul.f32 %v439, %v428
        %v441 = vadd.f32 %v437, %v440
        %s442 = sld [smem:[#allocation8 + $0x180]]
        %v443 = vstv %s442
        %v444 = vmul.f32 %v443, %v430
        %v445 = vadd.f32 %v441, %v444
        %s446 = sld [smem:[#allocation9]]
        %v447 = vstv %s446
        %v448 = vadd.f32 %v445, %v447
        %v449 = vxor.u32 %v448, 2147483648
        %v450 = vmul.f32 %v449, 1.442695
        %v451 = vpow.pop %v450
        %v452 = vadd.f32 %v451, 1.0
        %v453 = vrcp.pop %v452
        %v454 = vmul.f32 1.0, %v453
        %v455 = vld [vmem:[%s362] ss:$8 sm:$0x3]
        %v456 = vadd.f32 %v454, %v455
        %v457 = vmax.f32 %v456, 0.0
        %v458 = vmin.f32 %v457, 1.0
        %v459 = vlaneseq
        %vm460 = vcmp.ge.s32.totalorder %v459, 0
        %vm461 = vcmp.lt.s32.totalorder %v459, 256
        %vm462 = vmand %vm460, %vm461
        %463 = vst.msk [vmem:[%s419] ss:$8 sm:$0x3] %vm462, %v458
        %464 = vst.msk [vmem:[%s419] ss:$8 sm:$0x0] %vm462, %v458
        %s465 = sld [smem:[#allocation8 + $0x1]]
        %v466 = vstv %s465
        %v467 = vmul.f32 %v466, %v424
        %s468 = sld [smem:[#allocation8 + $0x81]]
        %v469 = vstv %s468
        %v470 = vmul.f32 %v469, %v426
        %v471 = vadd.f32 %v467, %v470
        %s472 = sld [smem:[#allocation8 + $0x101]]
        %v473 = vstv %s472
        %v474 = vmul.f32 %v473, %v428
        %v475 = vadd.f32 %v471, %v474
        %s476 = sld [smem:[#allocation8 + $0x181]]
        %v477 = vstv %s476
        %v478 = vmul.f32 %v477, %v430
        %v479 = vadd.f32 %v475, %v478
        %s480 = sld [smem:[#allocation9 + $0x1]]
        %v481 = vstv %s480
        %v482 = vadd.f32 %v479, %v481
        %v483 = vxor.u32 %v482, 2147483648
        %v484 = vmul.f32 %v483, 1.442695
        %v485 = vpow.pop %v484
        %v486 = vadd.f32 %v485, 1.0
        %v487 = vrcp.pop %v486
        %v488 = vmul.f32 1.0, %v487
        %s489 = scalar_lea.vmem %s362, 1 [#allocation6]
        %v490 = vld [vmem:[%s489] ss:$8 sm:$0x3]
        %v491 = vadd.f32 %v488, %v490
        %v492 = vmax.f32 %v491, 0.0
        %v493 = vmin.f32 %v492, 1.0
        %s494 = scalar_lea.vmem %s419, 1 [#allocation15]
        %495 = vst.msk [vmem:[%s494] ss:$8 sm:$0x3] %vm462, %v493
        %496 = vst.msk [vmem:[%s494] ss:$8 sm:$0x0] %vm462, %v493
        %s497 = sld [smem:[#allocation8 + $0x2]]
        %v498 = vstv %s497
        %v499 = vmul.f32 %v498, %v424
        %s500 = sld [smem:[#allocation8 + $0x82]]
        %v501 = vstv %s500
        %v502 = vmul.f32 %v501, %v426
        %v503 = vadd.f32 %v499, %v502
        %s504 = sld [smem:[#allocation8 + $0x102]]
        %v505 = vstv %s504
        %v506 = vmul.f32 %v505, %v428
        %v507 = vadd.f32 %v503, %v506
        %s508 = sld [smem:[#allocation8 + $0x182]]
        %v509 = vstv %s508
        %v510 = vmul.f32 %v509, %v430
        %v511 = vadd.f32 %v507, %v510
        %s512 = sld [smem:[#allocation9 + $0x2]]
        %v513 = vstv %s512
        %v514 = vadd.f32 %v511, %v513
        %v515 = vxor.u32 %v514, 2147483648
        %v516 = vmul.f32 %v515, 1.442695
        %v517 = vpow.pop %v516
        %v518 = vadd.f32 %v517, 1.0
        %v519 = vrcp.pop %v518
        %v520 = vmul.f32 1.0, %v519
        %s521 = scalar_lea.vmem %s362, 2 [#allocation6]
        %v522 = vld [vmem:[%s521] ss:$8 sm:$0x3]
        %v523 = vadd.f32 %v520, %v522
        %v524 = vmax.f32 %v523, 0.0
        %v525 = vmin.f32 %v524, 1.0
        %s526 = scalar_lea.vmem %s419, 2 [#allocation15]
        %527 = vst.msk [vmem:[%s526] ss:$8 sm:$0x3] %vm462, %v525
        %528 = vst.msk [vmem:[%s526] ss:$8 sm:$0x0] %vm462, %v525
        %s529 = sld [smem:[#allocation8 + $0x3]]
        %v530 = vstv %s529
        %v531 = vmul.f32 %v530, %v424
        %s532 = sld [smem:[#allocation8 + $0x83]]
        %v533 = vstv %s532
        %v534 = vmul.f32 %v533, %v426
        %v535 = vadd.f32 %v531, %v534
        %s536 = sld [smem:[#allocation8 + $0x103]]
        %v537 = vstv %s536
        %v538 = vmul.f32 %v537, %v428
        %v539 = vadd.f32 %v535, %v538
        %s540 = sld [smem:[#allocation8 + $0x183]]
        %v541 = vstv %s540
        %v542 = vmul.f32 %v541, %v430
        %v543 = vadd.f32 %v539, %v542
        %s544 = sld [smem:[#allocation9 + $0x3]]
        %v545 = vstv %s544
        %v546 = vadd.f32 %v543, %v545
        %v547 = vxor.u32 %v546, 2147483648
        %v548 = vmul.f32 %v547, 1.442695
        %v549 = vpow.pop %v548
        %v550 = vadd.f32 %v549, 1.0
        %v551 = vrcp.pop %v550
        %v552 = vmul.f32 1.0, %v551
        %s553 = scalar_lea.vmem %s362, 3 [#allocation6]
        %v554 = vld [vmem:[%s553] ss:$8 sm:$0x3]
        %v555 = vadd.f32 %v552, %v554
        %v556 = vmax.f32 %v555, 0.0
        %v557 = vmin.f32 %v556, 1.0
        %s558 = scalar_lea.vmem %s419, 3 [#allocation15]
        %559 = vst.msk [vmem:[%s558] ss:$8 sm:$0x3] %vm462, %v557
        %560 = vst.msk [vmem:[%s558] ss:$8 sm:$0x0] %vm462, %v557
        %s561 = sld [smem:[#allocation8 + $0x4]]
        %v562 = vstv %s561
        %v563 = vmul.f32 %v562, %v424
        %s564 = sld [smem:[#allocation8 + $0x84]]
        %v565 = vstv %s564
        %v566 = vmul.f32 %v565, %v426
        %v567 = vadd.f32 %v563, %v566
        %s568 = sld [smem:[#allocation8 + $0x104]]
        %v569 = vstv %s568
        %v570 = vmul.f32 %v569, %v428
        %v571 = vadd.f32 %v567, %v570
        %s572 = sld [smem:[#allocation8 + $0x184]]
        %v573 = vstv %s572
        %v574 = vmul.f32 %v573, %v430
        %v575 = vadd.f32 %v571, %v574
        %s576 = sld [smem:[#allocation9 + $0x4]]
        %v577 = vstv %s576
        %v578 = vadd.f32 %v575, %v577
        %v579 = vxor.u32 %v578, 2147483648
        %v580 = vmul.f32 %v579, 1.442695
        %v581 = vpow.pop %v580
        %v582 = vadd.f32 %v581, 1.0
        %v583 = vrcp.pop %v582
        %v584 = vmul.f32 1.0, %v583
        %s585 = scalar_lea.vmem %s362, 4 [#allocation6]
        %v586 = vld [vmem:[%s585] ss:$8 sm:$0x3]
        %v587 = vadd.f32 %v584, %v586
        %v588 = vmax.f32 %v587, 0.0
        %v589 = vmin.f32 %v588, 1.0
        %s590 = scalar_lea.vmem %s419, 4 [#allocation15]
        %591 = vst.msk [vmem:[%s590] ss:$8 sm:$0x3] %vm462, %v589
        %592 = vst.msk [vmem:[%s590] ss:$8 sm:$0x0] %vm462, %v589
        %s593 = sld [smem:[#allocation8 + $0x5]]
        %v594 = vstv %s593
        %v595 = vmul.f32 %v594, %v424
        %s596 = sld [smem:[#allocation8 + $0x85]]
        %v597 = vstv %s596
        %v598 = vmul.f32 %v597, %v426
        %v599 = vadd.f32 %v595, %v598
        %s600 = sld [smem:[#allocation8 + $0x105]]
        %v601 = vstv %s600
        %v602 = vmul.f32 %v601, %v428
        %v603 = vadd.f32 %v599, %v602
        %s604 = sld [smem:[#allocation8 + $0x185]]
        %v605 = vstv %s604
        %v606 = vmul.f32 %v605, %v430
        %v607 = vadd.f32 %v603, %v606
        %s608 = sld [smem:[#allocation9 + $0x5]]
        %v609 = vstv %s608
        %v610 = vadd.f32 %v607, %v609
        %v611 = vxor.u32 %v610, 2147483648
        %v612 = vmul.f32 %v611, 1.442695
        %v613 = vpow.pop %v612
        %v614 = vadd.f32 %v613, 1.0
        %v615 = vrcp.pop %v614
        %v616 = vmul.f32 1.0, %v615
        %s617 = scalar_lea.vmem %s362, 5 [#allocation6]
        %v618 = vld [vmem:[%s617] ss:$8 sm:$0x3]
        %v619 = vadd.f32 %v616, %v618
        %v620 = vmax.f32 %v619, 0.0
        %v621 = vmin.f32 %v620, 1.0
        %s622 = scalar_lea.vmem %s419, 5 [#allocation15]
        %623 = vst.msk [vmem:[%s622] ss:$8 sm:$0x3] %vm462, %v621
        %624 = vst.msk [vmem:[%s622] ss:$8 sm:$0x0] %vm462, %v621
        %s625 = sld [smem:[#allocation8 + $0x6]]
        %v626 = vstv %s625
        %v627 = vmul.f32 %v626, %v424
        %s628 = sld [smem:[#allocation8 + $0x86]]
        %v629 = vstv %s628
        %v630 = vmul.f32 %v629, %v426
        %v631 = vadd.f32 %v627, %v630
        %s632 = sld [smem:[#allocation8 + $0x106]]
        %v633 = vstv %s632
        %v634 = vmul.f32 %v633, %v428
        %v635 = vadd.f32 %v631, %v634
        %s636 = sld [smem:[#allocation8 + $0x186]]
        %v637 = vstv %s636
        %v638 = vmul.f32 %v637, %v430
        %v639 = vadd.f32 %v635, %v638
        %s640 = sld [smem:[#allocation9 + $0x6]]
        %v641 = vstv %s640
        %v642 = vadd.f32 %v639, %v641
        %v643 = vxor.u32 %v642, 2147483648
        %v644 = vmul.f32 %v643, 1.442695
        %v645 = vpow.pop %v644
        %v646 = vadd.f32 %v645, 1.0
        %v647 = vrcp.pop %v646
        %v648 = vmul.f32 1.0, %v647
        %s649 = scalar_lea.vmem %s362, 6 [#allocation6]
        %v650 = vld [vmem:[%s649] ss:$8 sm:$0x3]
        %v651 = vadd.f32 %v648, %v650
        %v652 = vmax.f32 %v651, 0.0
        %v653 = vmin.f32 %v652, 1.0
        %s654 = scalar_lea.vmem %s419, 6 [#allocation15]
        %655 = vst.msk [vmem:[%s654] ss:$8 sm:$0x3] %vm462, %v653
        %656 = vst.msk [vmem:[%s654] ss:$8 sm:$0x0] %vm462, %v653
        %s657 = sld [smem:[#allocation8 + $0x7]]
        %v658 = vstv %s657
        %v659 = vmul.f32 %v658, %v424
        %s660 = sld [smem:[#allocation8 + $0x87]]
        %v661 = vstv %s660
        %v662 = vmul.f32 %v661, %v426
        %v663 = vadd.f32 %v659, %v662
        %s664 = sld [smem:[#allocation8 + $0x107]]
        %v665 = vstv %s664
        %v666 = vmul.f32 %v665, %v428
        %v667 = vadd.f32 %v663, %v666
        %s668 = sld [smem:[#allocation8 + $0x187]]
        %v669 = vstv %s668
        %v670 = vmul.f32 %v669, %v430
        %v671 = vadd.f32 %v667, %v670
        %s672 = sld [smem:[#allocation9 + $0x7]]
        %v673 = vstv %s672
        %v674 = vadd.f32 %v671, %v673
        %v675 = vxor.u32 %v674, 2147483648
        %v676 = vmul.f32 %v675, 1.442695
        %v677 = vpow.pop %v676
        %v678 = vadd.f32 %v677, 1.0
        %v679 = vrcp.pop %v678
        %v680 = vmul.f32 1.0, %v679
        %s681 = scalar_lea.vmem %s362, 7 [#allocation6]
        %v682 = vld [vmem:[%s681] ss:$8 sm:$0x3]
        %v683 = vadd.f32 %v680, %v682
        %v684 = vmax.f32 %v683, 0.0
        %v685 = vmin.f32 %v684, 1.0
        %s686 = scalar_lea.vmem %s419, 7 [#allocation15]
        %687 = vst.msk [vmem:[%s686] ss:$8 sm:$0x3] %vm462, %v685
        %688 = vst.msk [vmem:[%s686] ss:$8 sm:$0x0] %vm462, %v685
        %s689 = sld [smem:[#allocation11]]
        %v690 = vstv %s689
        %v691 = vmul.f32 %v690, %v458
        %s692 = sld [smem:[#allocation11 + $0x80]]
        %v693 = vstv %s692
        %v694 = vmul.f32 %v693, %v493
        %v695 = vadd.f32 %v691, %v694
        %s696 = sld [smem:[#allocation11 + $0x100]]
        %v697 = vstv %s696
        %v698 = vmul.f32 %v697, %v525
        %v699 = vadd.f32 %v695, %v698
        %s700 = sld [smem:[#allocation11 + $0x180]]
        %v701 = vstv %s700
        %v702 = vmul.f32 %v701, %v557
        %v703 = vadd.f32 %v699, %v702
        %s704 = sld [smem:[#allocation11 + $0x200]]
        %v705 = vstv %s704
        %v706 = vmul.f32 %v705, %v589
        %v707 = vadd.f32 %v703, %v706
        %s708 = sld [smem:[#allocation11 + $0x280]]
        %v709 = vstv %s708
        %v710 = vmul.f32 %v709, %v621
        %v711 = vadd.f32 %v707, %v710
        %s712 = sld [smem:[#allocation11 + $0x300]]
        %v713 = vstv %s712
        %v714 = vmul.f32 %v713, %v653
        %v715 = vadd.f32 %v711, %v714
        %s716 = sld [smem:[#allocation11 + $0x380]]
        %v717 = vstv %s716
        %v718 = vmul.f32 %v717, %v685
        %v719 = vadd.f32 %v715, %v718
        %s720 = sld [smem:[#allocation12]]
        %v721 = vstv %s720
        %v722 = vadd.f32 %v719, %v721
        %723 = vst.msk [vmem:[%s412] ss:$4 sm:$0x3] %vm462, %v722
        %s724 = sld [smem:[#allocation11 + $0x1]]
        %v725 = vstv %s724
        %v726 = vmul.f32 %v725, %v458
        %s727 = sld [smem:[#allocation11 + $0x81]]
        %v728 = vstv %s727
        %v729 = vmul.f32 %v728, %v493
        %v730 = vadd.f32 %v726, %v729
        %s731 = sld [smem:[#allocation11 + $0x101]]
        %v732 = vstv %s731
        %v733 = vmul.f32 %v732, %v525
        %v734 = vadd.f32 %v730, %v733
        %s735 = sld [smem:[#allocation11 + $0x181]]
        %v736 = vstv %s735
        %v737 = vmul.f32 %v736, %v557
        %v738 = vadd.f32 %v734, %v737
        %s739 = sld [smem:[#allocation11 + $0x201]]
        %v740 = vstv %s739
        %v741 = vmul.f32 %v740, %v589
        %v742 = vadd.f32 %v738, %v741
        %s743 = sld [smem:[#allocation11 + $0x281]]
        %v744 = vstv %s743
        %v745 = vmul.f32 %v744, %v621
        %v746 = vadd.f32 %v742, %v745
        %s747 = sld [smem:[#allocation11 + $0x301]]
        %v748 = vstv %s747
        %v749 = vmul.f32 %v748, %v653
        %v750 = vadd.f32 %v746, %v749
        %s751 = sld [smem:[#allocation11 + $0x381]]
        %v752 = vstv %s751
        %v753 = vmul.f32 %v752, %v685
        %v754 = vadd.f32 %v750, %v753
        %s755 = sld [smem:[#allocation12 + $0x1]]
        %v756 = vstv %s755
        %v757 = vadd.f32 %v754, %v756
        %s758 = scalar_lea.vmem %s412, 1 [#allocation14]
        %759 = vst.msk [vmem:[%s758] ss:$4 sm:$0x3] %vm462, %v757
        %s760 = sld [smem:[#allocation11 + $0x2]]
        %v761 = vstv %s760
        %v762 = vmul.f32 %v761, %v458
        %s763 = sld [smem:[#allocation11 + $0x82]]
        %v764 = vstv %s763
        %v765 = vmul.f32 %v764, %v493
        %v766 = vadd.f32 %v762, %v765
        %s767 = sld [smem:[#allocation11 + $0x102]]
        %v768 = vstv %s767
        %v769 = vmul.f32 %v768, %v525
        %v770 = vadd.f32 %v766, %v769
        %s771 = sld [smem:[#allocation11 + $0x182]]
        %v772 = vstv %s771
        %v773 = vmul.f32 %v772, %v557
        %v774 = vadd.f32 %v770, %v773
        %s775 = sld [smem:[#allocation11 + $0x202]]
        %v776 = vstv %s775
        %v777 = vmul.f32 %v776, %v589
        %v778 = vadd.f32 %v774, %v777
        %s779 = sld [smem:[#allocation11 + $0x282]]
        %v780 = vstv %s779
        %v781 = vmul.f32 %v780, %v621
        %v782 = vadd.f32 %v778, %v781
        %s783 = sld [smem:[#allocation11 + $0x302]]
        %v784 = vstv %s783
        %v785 = vmul.f32 %v784, %v653
        %v786 = vadd.f32 %v782, %v785
        %s787 = sld [smem:[#allocation11 + $0x382]]
        %v788 = vstv %s787
        %v789 = vmul.f32 %v788, %v685
        %v790 = vadd.f32 %v786, %v789
        %s791 = sld [smem:[#allocation12 + $0x2]]
        %v792 = vstv %s791
        %v793 = vadd.f32 %v790, %v792
        %s794 = scalar_lea.vmem %s412, 2 [#allocation14]
        %795 = vst.msk [vmem:[%s794] ss:$4 sm:$0x3] %vm462, %v793
        %s796 = sld [smem:[#allocation11 + $0x3]]
        %v797 = vstv %s796
        %v798 = vmul.f32 %v797, %v458
        %s799 = sld [smem:[#allocation11 + $0x83]]
        %v800 = vstv %s799
        %v801 = vmul.f32 %v800, %v493
        %v802 = vadd.f32 %v798, %v801
        %s803 = sld [smem:[#allocation11 + $0x103]]
        %v804 = vstv %s803
        %v805 = vmul.f32 %v804, %v525
        %v806 = vadd.f32 %v802, %v805
        %s807 = sld [smem:[#allocation11 + $0x183]]
        %v808 = vstv %s807
        %v809 = vmul.f32 %v808, %v557
        %v810 = vadd.f32 %v806, %v809
        %s811 = sld [smem:[#allocation11 + $0x203]]
        %v812 = vstv %s811
        %v813 = vmul.f32 %v812, %v589
        %v814 = vadd.f32 %v810, %v813
        %s815 = sld [smem:[#allocation11 + $0x283]]
        %v816 = vstv %s815
        %v817 = vmul.f32 %v816, %v621
        %v818 = vadd.f32 %v814, %v817
        %s819 = sld [smem:[#allocation11 + $0x303]]
        %v820 = vstv %s819
        %v821 = vmul.f32 %v820, %v653
        %v822 = vadd.f32 %v818, %v821
        %s823 = sld [smem:[#allocation11 + $0x383]]
        %v824 = vstv %s823
        %v825 = vmul.f32 %v824, %v685
        %v826 = vadd.f32 %v822, %v825
        %s827 = sld [smem:[#allocation12 + $0x3]]
        %v828 = vstv %s827
        %v829 = vadd.f32 %v826, %v828
        %s830 = scalar_lea.vmem %s412, 3 [#allocation14]
        %831 = vst.msk [vmem:[%s830] ss:$4 sm:$0x3] %vm462, %v829
        %s832 = sand.u32 %s196, 1
        %s833 = scalar_lea.sflag [#allocation4], %s832
        %s834 = sand.u32 %s196, 1
        %s835 = smul.addr %s834, 8
        %s836 = scalar_lea.vmem [#allocation14], %s835
        %s837 = sand.u32 %s224, 1
        %s838 = scalar_lea.sflag [#allocation16], %s837
        %s839 = sand.u32 %s224, 1
        %s840 = smul.addr %s839, 16
        %s841 = scalar_lea.vmem [#allocation15], %s840
        // Predicated region
        $region69: #{tpu_custom_call.1} parent=43 // pred_check
          %p842 = pneg %p206
        $region70: #{tpu_custom_call.1} parent=43 // pred_check_branch
          %844 = sbr.rel (%p842) target = $region72
        $region71: #{tpu_custom_call.1} parent=43 // pred_region
          %s845 = smul.u32 2, %s39
          %s847 = ssub.s32 128, 128
          %848 = vsyncadd %s833, %s847
          %s849 = smul.addr %s38, 2
          %s850 = sadd.s32 %s845, %s849
          %s851 = smul.addr %s850, 64
          %s852 = scalar_lea.hbm %s6, %s851
          %s854 = sshll.u32 %s836, 4
          %s855 = int_to_ptr.vmem [resolvable:$true] %s854
          %857 = dma.vmem_to_hbm [thread:$0]  %s855, 128, %s852, %s833
        $region72: #{tpu_custom_call.1} parent=43 // pred_fallthru
          _
        // Predicated region
        $region73: #{tpu_custom_call.1} parent=43 // pred_check
          %p858 = pneg %p234
        $region74: #{tpu_custom_call.1} parent=43 // pred_check_branch
          %860 = sbr.rel (%p858) target = $region76
        $region75: #{tpu_custom_call.1} parent=43 // pred_region
          %s861 = smul.u32 2, %s39
          %s863 = ssub.s32 256, 256
          %864 = vsyncadd %s838, %s863
          %s865 = smul.addr %s38, 2
          %s866 = sadd.s32 %s861, %s865
          %s867 = smul.addr %s866, 128
          %s868 = scalar_lea.hbm %s7, %s867
          %s870 = sshll.u32 %s841, 4
          %s871 = int_to_ptr.vmem [resolvable:$true] %s870
          %873 = dma.vmem_to_hbm [thread:$0]  %s871, 256, %s868, %s838
        $region76: #{tpu_custom_call.1} parent=43 // pred_fallthru
          _
      $region44: #{tpu_custom_call.1} parent=5 // pred_fallthru
        _
      %p874 = scmp.le.s32.totalorder 2, %s29
      // Predicated region
      $region77: #{tpu_custom_call.1} parent=5 // pred_check
        %p875 = pneg %p874
      $region78: #{tpu_custom_call.1} parent=5 // pred_check_branch
        %877 = sbr.rel (%p875) target = $region80
      $region79: #{tpu_custom_call.1} parent=5 // pred_region
        %s878 = ssub.s32 %s29, 2
        // Predicated region
        $region81: #{tpu_custom_call.1} parent=79 // pred_check
          %p879 = pneg %p212
        $region82: #{tpu_custom_call.1} parent=79 // pred_check_branch
          %881 = sbr.rel (%p879) target = $region84
        $region83: #{tpu_custom_call.1} parent=79 // pred_region
          %s882 = sand.u32 %s197, 1
          %s883 = scalar_lea.sflag [#allocation4], %s882
          %s884 = sand.u32 %s197, 1
          %s885 = smul.addr %s884, 8
          %s886 = scalar_lea.vmem [#allocation14], %s885
          %887 = dma.done %s883, 128
        $region84: #{tpu_custom_call.1} parent=79 // pred_fallthru
          _
        // Predicated region
        $region85: #{tpu_custom_call.1} parent=79 // pred_check
          %p888 = pneg %p240
        $region86: #{tpu_custom_call.1} parent=79 // pred_check_branch
          %890 = sbr.rel (%p888) target = $region88
        $region87: #{tpu_custom_call.1} parent=79 // pred_region
          %s891 = sand.u32 %s225, 1
          %s892 = scalar_lea.sflag [#allocation16], %s891
          %s893 = sand.u32 %s225, 1
          %s894 = smul.addr %s893, 16
          %s895 = scalar_lea.vmem [#allocation15], %s894
          %896 = dma.done %s892, 256
        $region88: #{tpu_custom_call.1} parent=79 // pred_fallthru
          _
      $region80: #{tpu_custom_call.1} parent=5 // pred_fallthru
        _
    $region6: #{tpu_custom_call.1} parent=1 // loop_footer
      %s33 = sadd.s32 1, %s29
    $region7: #{tpu_custom_call.1} parent=1 // loop_footer_branch
      %28 = sbr.rel target = $region3
    $region8: #{tpu_custom_call.1} parent=1 // loop_exit
      _
    %897 = vsyncpa [#allocation3], 1
    %s898 = scalar_lea.sflag [#allocation3], 1
    %899 = vsyncpa %s898, 1
    %900 = vsyncpa [#allocation7], 1
    %s901 = scalar_lea.sflag [#allocation7], 1
    %902 = vsyncpa %s901, 1
    %903 = vsyncpa [#allocation4], 1
    %s904 = scalar_lea.sflag [#allocation4], 1
    %905 = vsyncpa %s904, 1
    %906 = vsyncpa [#allocation16], 1
    %s907 = scalar_lea.sflag [#allocation16], 1
    %908 = vsyncpa %s907, 1
    %909 = vsyncpa [#allocation5], 1
    %s910 = scalar_lea.sflag [#allocation5], 1
    %911 = vsyncpa %s910, 1
    %912 = vsyncpa [#allocation10], 1
    %913 = vsyncpa [#allocation13], 1

</llo_original>
